<compile_context>
chip_gen: v7x
topology: tpu7x:2x2x1
jax: 0.10.0
libtpu: 0.0.40
codegen_flags: <defaults>
</compile_context>

<pallas_src>
import functools

import jax
import jax.numpy as jnp
from jax import lax
from jax.experimental import pallas as pl
from jax.experimental.pallas import tpu as pltpu

BN_EPS = 1e-5                      # PyTorch BatchNorm2d default eps
LANE = 128


def _round_up(x, m):
    return (x + m - 1) // m * m


def _pad2d(x, rows, cols):
    pr, pc = rows - x.shape[0], cols - x.shape[1]
    if pr == 0 and pc == 0:
        return x
    return jnp.pad(x, ((0, pr), (0, pc)))


@functools.lru_cache(maxsize=None)
def _vmem_limit():
    """Generation-aware scoped-VMEM request: ~96 MiB on 128-MiB parts (v5e/v6e),
    ~48 MiB on 64-MiB parts (v7x); conservative 32 MiB if the query fails."""
    try:
        cap = int(pltpu.get_tpu_info().vmem_capacity_bytes)
        return int(min(96 * 1024 * 1024, cap * 3 // 4))
    except Exception:
        return 32 * 1024 * 1024


def _pick_tk(K, cap=512):
    """Largest multiple-of-128 tile <= cap that divides round_up(K, 128)."""
    Kp = _round_up(K, LANE)
    tk, t = LANE, LANE
    while t <= min(cap, Kp):
        if Kp % t == 0:
            tk = t
        t += LANE
    return tk


# ---------------------------------------------------------------------------
# Kernel 1: tiled fused matmul   out = A @ B + bias [+ ReLU]
# ---------------------------------------------------------------------------
def _matmul_kernel(a_ref, b_ref, bias_ref, o_ref, acc_ref, *, relu):
    k = pl.program_id(2)

    @pl.when(k == 0)
    def _():
        acc_ref[...] = jnp.zeros_like(acc_ref)

    acc_ref[...] += jnp.dot(a_ref[...], b_ref[...],
                            preferred_element_type=jnp.float32)

    @pl.when(k == pl.num_programs(2) - 1)
    def _():
        r = acc_ref[...] + bias_ref[...]
        if relu:
            r = jnp.maximum(r, 0.0)
        o_ref[...] = r.astype(o_ref.dtype)


def matmul_fused(a, b, bias, relu=False, out_dtype=jnp.bfloat16,
                 tm=256, tn=256, tk=None):
    """A:(M,K) @ B:(K,N) + bias:(N,) [ReLU], bf16 inputs / f32 accumulation."""
    M, K = a.shape
    K2, N = b.shape
    assert K == K2
    if tk is None:
        tk = _pick_tk(K)          # e.g. K=1152 -> tk=384 (no zero-padded K work)
    tm = min(tm, _round_up(M, 8))
    tn = min(tn, _round_up(N, LANE))
    tk = min(tk, _round_up(K, LANE))
    # Ensure the parallel (i, j) grid has >= 2 points on small late-layer calls so
    # v7x's two TensorCores both get work (no effect on single-TC v5e/v6e).
    if _round_up(M, tm) // tm == 1 and _round_up(N, tn) // tn == 1 and M >= 32:
        tm = _round_up((M + 1) // 2, 8)
    Mp, Kp, Np = _round_up(M, tm), _round_up(K, tk), _round_up(N, tn)

    a_p = _pad2d(a.astype(jnp.bfloat16), Mp, Kp)
    b_p = _pad2d(b.astype(jnp.bfloat16), Kp, Np)
    bias_p = _pad2d(bias.reshape(1, -1).astype(jnp.float32), 1, Np)

    out = pl.pallas_call(
        functools.partial(_matmul_kernel, relu=relu),
        out_shape=jax.ShapeDtypeStruct((Mp, Np), out_dtype),
        grid=(Mp // tm, Np // tn, Kp // tk),
        in_specs=[
            pl.BlockSpec((tm, tk), lambda i, j, k: (i, k)),
            pl.BlockSpec((tk, tn), lambda i, j, k: (k, j)),
            pl.BlockSpec((1, tn), lambda i, j, k: (0, j)),
        ],
        out_specs=pl.BlockSpec((tm, tn), lambda i, j, k: (i, j)),
        scratch_shapes=[pltpu.VMEM((tm, tn), jnp.float32)],
        compiler_params=pltpu.CompilerParams(
            dimension_semantics=("parallel", "parallel", "arbitrary"),
            vmem_limit_bytes=_vmem_limit()),
    )(a_p, b_p, bias_p)
    if Mp != M or Np != N:
        out = out[:M, :N]
    return out


# ---------------------------------------------------------------------------
# Kernel 2: fused 3x3 / stride-1 conv (folded BN) [+ residual] [+ ReLU]
#   implicit im2col on a halo-padded, flattened (rows = H*Wp) image block.
#   Aligned slices + XLU rotates; one wide MXU matmul per vertical tap offset.
# ---------------------------------------------------------------------------
def _conv3x3_s1_kernel(x_ref, w_ref, bias_ref, *rest,
                       Wp, Rblk, cout, relu, has_res):
    if has_res:
        res_ref, o_ref = rest
    else:
        (o_ref,) = rest
    row0 = pl.program_id(1) * Rblk
    acc = None
    for di in range(3):
        base = pl.multiple_of(row0 + di * Wp, 8)   # Wp, Rblk are multiples of 8
        # One wide matmul covers the three horizontal taps (dj = 0,1,2) for this
        # vertical offset; the column shifts become sublane rotates of the f32
        # result.  Rotate wrap-around only corrupts the junk columns of each
        # image row (col >= w), which the wrapper crops away.
        y = jnp.dot(x_ref[pl.ds(base, Rblk), :], w_ref[di],
                    preferred_element_type=jnp.float32)         # (Rblk, 3*cout)
        t = y[:, :cout]
        t = t + pltpu.roll(y[:, cout:2 * cout], Rblk - 1, axis=0)
        t = t + pltpu.roll(y[:, 2 * cout:3 * cout], Rblk - 2, axis=0)
        acc = t if acc is None else acc + t
    acc = acc + bias_ref[...]
    if has_res:
        # Residual arrives in the same halo-padded flat layout, i.e. shifted by
        # Wp + 1 flat rows: read the aligned slice and rotate by one row.
        rstart = pl.multiple_of(row0 + Wp, 8)
        res = res_ref[pl.ds(rstart, Rblk), :].astype(jnp.float32)
        acc = acc + pltpu.roll(res, Rblk - 1, axis=0)
    if relu:
        acc = jnp.maximum(acc, 0.0)
    o_ref[...] = acc.astype(o_ref.dtype)


def _halo_pad(x):
    """NHWC -> halo-padded flat layout (n, (h+3)*Wp, c) bf16, Wp = round_up(w+2, 8)."""
    n, h, w, c = x.shape
    Wp = _round_up(w + 2, 8)
    xp = jnp.pad(x.astype(jnp.bfloat16),
                 ((0, 0), (1, 2), (1, Wp - w - 1), (0, 0)))
    return xp.reshape(n, (h + 3) * Wp, c), (h, w, Wp)


def conv3x3_s1(x_halo, geom, w9, bias, residual_halo=None, relu=True):
    """3x3 / stride-1 / pad-1 conv with folded BN [+ residual] [+ ReLU].

    x_halo / residual_halo are in the halo-padded flat layout from _halo_pad;
    w9 is (9, cin, cout) (kh-major, kw, channels).  Returns NHWC (n, h, w, cout).
    """
    h, w, Wp = geom
    n, brows, cin = x_halo.shape
    cout = w9.shape[-1]
    rout = h * Wp
    # Row-block the flattened output so the grid has several steps per image
    # (pipelining + megacore work on v7x) and the f32 temporaries stay bounded.
    d = 1
    for cand in range(1, h + 1):
        if h % cand == 0 and cand * Wp <= max(512, Wp):
            d = cand
    Rblk, n_rb = d * Wp, h // d

    # Concatenate the three horizontal taps so each vertical offset is one wide
    # MXU matmul (N = 3*cout -> better MXU lane occupancy at cout = 128).
    w_cat = jnp.transpose(w9.reshape(3, 3, cin, cout), (0, 2, 1, 3))
    w_cat = w_cat.reshape(3, cin, 3 * cout).astype(jnp.bfloat16)

    has_res = residual_halo is not None
    in_specs = [
        pl.BlockSpec((None, brows, cin), lambda i, rb: (i, 0, 0)),
        pl.BlockSpec((3, cin, 3 * cout), lambda i, rb: (0, 0, 0)),
        pl.BlockSpec((1, cout), lambda i, rb: (0, 0)),
    ]
    operands = [x_halo, w_cat, bias.reshape(1, -1).astype(jnp.float32)]
    if has_res:
        in_specs.append(pl.BlockSpec((None, brows, cout), lambda i, rb: (i, 0, 0)))
        operands.append(residual_halo)

    out = pl.pallas_call(
        functools.partial(_conv3x3_s1_kernel, Wp=Wp, Rblk=Rblk, cout=cout,
                          relu=relu, has_res=has_res),
        out_shape=jax.ShapeDtypeStruct((n, rout, cout), jnp.bfloat16),
        grid=(n, n_rb),
        in_specs=in_specs,
        out_specs=pl.BlockSpec((None, Rblk, cout), lambda i, rb: (i, rb, 0)),
        compiler_params=pltpu.CompilerParams(
            dimension_semantics=("parallel", "parallel"),
            vmem_limit_bytes=_vmem_limit()),
    )(*operands)
    # TODO(synk): keep the halo-padded layout resident into the next conv instead
    # of cropping here and re-padding outside (would save one HBM copy per conv).
    return out.reshape(n, h, Wp, cout)[:, :, :w, :]


# ---------------------------------------------------------------------------
# im2col path (stem 7x7/s2 and 3x3/s2 downsampling convs) + 1x1 shortcut convs
# ---------------------------------------------------------------------------
def _im2col(x, k, stride, pad):
    n, h, w, c = x.shape
    xp = jnp.pad(x, ((0, 0), (pad, pad), (pad, pad), (0, 0)))
    ho = (h + 2 * pad - k) // stride + 1
    wo = (w + 2 * pad - k) // stride + 1
    cols = []
    for i in range(k):
        for j in range(k):
            cols.append(xp[:, i:i + ho * stride:stride,
                           j:j + wo * stride:stride, :])
    patches = jnp.concatenate(cols, axis=-1)
    return patches.reshape(n * ho * wo, k * k * c), (n, ho, wo)


def _conv_im2col(x, w2d, bias, k, stride, pad, relu):
    # TODO(synk): the strided convs (7x7/s2 stem, 3x3/s2 downsample) still
    # materialize the im2col patch matrix in HBM; an implicit-im2col strided
    # kernel would remove that round trip.
    patches, (n, ho, wo) = _im2col(x.astype(jnp.bfloat16), k, stride, pad)
    out = matmul_fused(patches, w2d, bias, relu=relu)
    return out.reshape(n, ho, wo, -1)


def _conv1x1(x, w, bias, stride, relu):
    if stride > 1:
        x = x[:, ::stride, ::stride, :]
    n, h, wd, c = x.shape
    out = matmul_fused(x.reshape(n * h * wd, c), w, bias, relu=relu)
    return out.reshape(n, h, wd, -1)


# ---------------------------------------------------------------------------
# Pooling (left to XLA: tiny, purely memory-bound, no MXU work)
# ---------------------------------------------------------------------------
def _maxpool_3x3_s2(x):
    # TODO(synk): maxpool kept as XLA reduce_window.
    return lax.reduce_window(x, jnp.array(-jnp.inf, x.dtype), lax.max,
                             (1, 3, 3, 1), (1, 2, 2, 1),
                             ((0, 0), (1, 1), (1, 1), (0, 0)))


def _avgpool_4(x):
    # TODO(synk): avg_pool2d(kernel=4, stride=4) kept as XLA reduce_window.
    s = lax.reduce_window(x.astype(jnp.float32), 0.0, lax.add,
                          (1, 4, 4, 1), (1, 4, 4, 1), 'VALID')
    return s / 16.0


# ---------------------------------------------------------------------------
# Forward pass (== ImageNet_ResNet.forward -> flattened pooled features)
# ---------------------------------------------------------------------------
def basic_block_forward(x, p):
    stride = p['stride']
    if stride == 1:
        x_halo, geom = _halo_pad(x)
        out = conv3x3_s1(x_halo, geom, p['conv1']['w'], p['conv1']['b'],
                         relu=True)
    else:
        w1 = p['conv1']['w']
        out = _conv_im2col(x, w1.reshape(-1, w1.shape[-1]), p['conv1']['b'],
                           k=3, stride=stride, pad=1, relu=True)
    if 'shortcut' in p:
        sc = _conv1x1(x, p['shortcut']['w'], p['shortcut']['b'], stride,
                      relu=False)
        res_halo, _ = _halo_pad(sc)
    else:
        # Identity shortcut: reuse the already halo-padded conv1 input buffer
        # (no extra XLA pad / HBM copy for the residual).
        res_halo = x_halo
    out_halo, geom = _halo_pad(out)
    # conv2 (3x3/s1) with residual add + ReLU fused into its epilogue.
    return conv3x3_s1(out_halo, geom, p['conv2']['w'], p['conv2']['b'],
                      residual_halo=res_halo, relu=True)


def resnet_features(params, x_nchw):
    """ImageNet_ResNet.forward(x): returns the flattened pooled features."""
    x = jnp.transpose(x_nchw, (0, 2, 3, 1)).astype(jnp.bfloat16)   # NCHW->NHWC
    h = _conv_im2col(x, params['stem']['w'], params['stem']['b'],
                     k=7, stride=2, pad=3, relu=True)              # conv1+bn+relu
    h = _maxpool_3x3_s2(h)
    for blk in params['blocks']:
        h = basic_block_forward(h, blk)
    pooled = _avgpool_4(h)                                         # (N,1,1,Cp)
    pooled = pooled[:, :, :, :params['c_final']]                   # drop pad chans
    n = pooled.shape[0]
    feat = jnp.transpose(pooled, (0, 3, 1, 2)).reshape(n, -1)      # torch .view order
    return feat.astype(jnp.float32)


# ---------------------------------------------------------------------------
# Deterministic init (conv + inference-mode BN with general running stats)
# ---------------------------------------------------------------------------
def _fold_bn(w, gamma, beta, mean, var, eps=BN_EPS):
    scale = gamma / jnp.sqrt(var + eps)
    return w * scale, beta - mean * scale


def _init_conv_bn(key, kh, kw, cin, cout, cin_pad, cout_pad):
    # TODO(synk): the blanket 128-lane channel padding inflates early-stage work
    # for tiny nf (e.g. 8); kept for layout simplicity (production nf>=64 makes
    # it at most 2x in layer1).
    ks = jax.random.split(key, 5)
    fan_in = kh * kw * cin
    w = jax.random.normal(ks[0], (kh, kw, cin, cout), jnp.float32) * (2.0 / fan_in) ** 0.5
    gamma = 1.0 + 0.1 * jax.random.normal(ks[1], (cout,), jnp.float32)
    beta = 0.1 * jax.random.normal(ks[2], (cout,), jnp.float32)
    mean = 0.1 * jax.random.normal(ks[3], (cout,), jnp.float32)
    var = 1.0 + 0.1 * jax.random.uniform(ks[4], (cout,), jnp.float32)
    wf, bf = _fold_bn(w, gamma, beta, mean, var)
    wf = jnp.pad(wf, ((0, 0), (0, 0), (0, cin_pad - cin), (0, cout_pad - cout)))
    bf = jnp.pad(bf, ((0, cout_pad - cout),))
    return wf, bf


def _init_block(key, in_planes, planes, stride):
    cinp = _round_up(in_planes, LANE)
    coutp = _round_up(planes, LANE)
    k1, k2, k3 = jax.random.split(key, 3)
    w1, b1 = _init_conv_bn(k1, 3, 3, in_planes, planes, cinp, coutp)
    w2, b2 = _init_conv_bn(k2, 3, 3, planes, planes, coutp, coutp)
    p = {'stride': stride,
         'conv1': {'w': w1.reshape(9, cinp, coutp), 'b': b1},
         'conv2': {'w': w2.reshape(9, coutp, coutp), 'b': b2}}
    if stride != 1 or in_planes != planes:
        ws, bs = _init_conv_bn(k3, 1, 1, in_planes, planes, cinp, coutp)
        p['shortcut'] = {'w': ws.reshape(cinp, coutp), 'b': bs}
    return p


def init_resnet_params(key, num_blocks=(2, 2, 2, 2), nf=8, input_channels=3):
    keys = jax.random.split(key, 1 + sum(num_blocks))
    coutp0 = _round_up(nf, LANE)
    ws, bs = _init_conv_bn(keys[0], 7, 7, input_channels, nf,
                           input_channels, coutp0)
    params = {'stem': {'w': ws.reshape(49 * input_channels, coutp0), 'b': bs}}
    blocks = []
    in_planes = nf
    idx = 1
    for nb, mult, stride0 in zip(num_blocks, (1, 2, 4, 8), (1, 2, 2, 2)):
        planes = nf * mult
        for s in [stride0] + [1] * (nb - 1):
            blocks.append(_init_block(keys[idx], in_planes, planes, s))
            in_planes = planes
            idx += 1
    params['blocks'] = blocks
    params['c_final'] = in_planes          # = 8 * nf (dim_in of the module)
    return params


# ---------------------------------------------------------------------------
if __name__ == "__main__":
    key = jax.random.PRNGKey(0)
    kx, kw, kb, kr, ka, kbm = jax.random.split(key, 6)

    # --- unit check: fused 3x3/s1 conv (+bias, +residual, +ReLU) vs lax.conv ---
    n_t, h_t, w_t, cin_t, cout_t = 2, 8, 8, 128, 128
    xs = jax.random.normal(kx, (n_t, h_t, w_t, cin_t), jnp.float32).astype(jnp.bfloat16)
    wsr = (0.05 * jax.random.normal(kw, (3, 3, cin_t, cout_t), jnp.float32)).astype(jnp.bfloat16)
    bsr = 0.1 * jax.random.normal(kb, (cout_t,), jnp.float32)
    rsr = jax.random.normal(kr, (n_t, h_t, w_t, cout_t), jnp.float32).astype(jnp.bfloat16)

    xh, geom = _halo_pad(xs)
    rh, _ = _halo_pad(rsr)
    got = conv3x3_s1(xh, geom, wsr.reshape(9, cin_t, cout_t), bsr,
                     residual_halo=rh, relu=True).astype(jnp.float32)
    ref = lax.conv_general_dilated(
        xs.astype(jnp.float32), wsr.astype(jnp.float32), (1, 1),
        ((1, 1), (1, 1)), dimension_numbers=('NHWC', 'HWIO', 'NHWC'))
    ref = jnp.maximum(ref + bsr.reshape(1, 1, 1, -1) + rsr.astype(jnp.float32), 0.0)
    assert jnp.allclose(got, ref, atol=5e-2, rtol=5e-2), \
        float(jnp.max(jnp.abs(got - ref)))

    # --- unit check: fused matmul ----------------------------------------------
    a = jax.random.normal(ka, (64, 200), jnp.float32).astype(jnp.bfloat16)
    bm = (0.1 * jax.random.normal(kbm, (200, 96), jnp.float32)).astype(jnp.bfloat16)
    bias = jnp.ones((96,), jnp.float32)
    got_m = matmul_fused(a, bm, bias, relu=True).astype(jnp.float32)
    ref_m = jnp.maximum(a.astype(jnp.float32) @ bm.astype(jnp.float32) + bias, 0.0)
    assert jnp.allclose(got_m, ref_m, atol=5e-2, rtol=5e-2)

    # --- full forward pass (== ImageNet_ResNet.forward) -------------------------
    # nf=8, batch=2, 112x112 input: the smallest spatial size for which the
    # 7x7/s2 stem -> maxpool -> 4 stages -> avg_pool2d(4) chain is well-defined.
    nf = 8
    B, C_in, H, W = 2, 3, 112, 112
    kp, kxi = jax.random.split(jax.random.PRNGKey(0))
    params = init_resnet_params(kp, num_blocks=(2, 2, 2, 2), nf=nf,
                                input_channels=C_in)
    x = jax.random.normal(kxi, (B, C_in, H, W), jnp.float32)

    # Static config (strides / c_final) is captured in the closure -> jit fuses
    # all inter-kernel pad/crop/im2col glue ops.
    fwd = jax.jit(functools.partial(resnet_features, params))
    feats = jax.block_until_ready(fwd(x))          # == module.forward(x)

    assert feats.shape == (B, 8 * nf), feats.shape
    assert bool(jnp.all(jnp.isfinite(feats)))
    print("KERNEL_OK")
</pallas_src>

<mosaic_0001>
module attributes {stable_mosaic.version = 11 : i64} {
  func.func @_conv3x3_s1_kernel(%arg0: i32, %arg1: i32, %arg2: memref<1x176x128xbf16, #tpu.memory_space<vmem>>, %arg3: memref<3x128x384xbf16, #tpu.memory_space<vmem>>, %arg4: memref<1x128xf32, #tpu.memory_space<vmem>>, %arg5: memref<1x176x128xbf16, #tpu.memory_space<vmem>>, %arg6: memref<1x128x128xbf16, #tpu.memory_space<vmem>>) attributes {dimension_semantics = [#tpu.dimension_semantics<parallel>, #tpu.dimension_semantics<parallel>], iteration_bounds = array<i64: 2, 1>, scalar_prefetch = 0 : i64, scratch_operands = 0 : i64, tpu.core_type = #tpu.core_type<tc>, window_params = [{transform_indices = @transform_0, window_bounds = array<i64: 1, 176, 128>}, {pipeline_mode = #tpu.pipeline_mode<synchronous>, transform_indices = @transform_1, window_bounds = array<i64: 3, 128, 384>}, {pipeline_mode = #tpu.pipeline_mode<synchronous>, transform_indices = @transform_2, window_bounds = array<i64: 1, 128>}, {transform_indices = @transform_3, window_bounds = array<i64: 1, 176, 128>}, {transform_indices = @transform_4, window_bounds = array<i64: 1, 128, 128>}]} {
    %c128_i32 = arith.constant 128 : i32
    %0 = arith.muli %arg1, %c128_i32 : i32
    %c0_i32 = arith.constant 0 : i32
    %1 = arith.addi %0, %c0_i32 : i32
    %2 = tpu.assume_multiple %1, 8 : i32
    %c0 = arith.constant 0 : index
    %3 = arith.index_cast %2 : i32 to index
    %c0_0 = arith.constant 0 : index
    %4 = vector.load %arg2[%c0, %3, %c0_0] : memref<1x176x128xbf16, #tpu.memory_space<vmem>>, vector<1x128x128xbf16>
    %5 = vector.shape_cast %4 : vector<1x128x128xbf16> to vector<128x128xbf16>
    %c0_1 = arith.constant 0 : index
    %c0_2 = arith.constant 0 : index
    %c0_3 = arith.constant 0 : index
    %6 = vector.load %arg3[%c0_1, %c0_2, %c0_3] : memref<3x128x384xbf16, #tpu.memory_space<vmem>>, vector<1x128x384xbf16>
    %7 = vector.shape_cast %6 : vector<1x128x384xbf16> to vector<128x384xbf16>
    %cst = arith.constant dense<0.000000e+00> : vector<128x384xf32>
    %8 = tpu.matmul %5, %7, %cst {dimension_numbers = #tpu.dot_dimension_numbers<[1], [0], [0], [1], [0, 0, 1, 1], [], []>} : vector<128x128xbf16>, vector<128x384xbf16>, vector<128x384xf32> -> vector<128x384xf32>
    %9 = vector.extract_strided_slice %8 {offsets = [0, 0], sizes = [128, 128], strides = [1, 1]} : vector<128x384xf32> to vector<128x128xf32>
    %10 = vector.extract_strided_slice %8 {offsets = [0, 128], sizes = [128, 128], strides = [1, 1]} : vector<128x384xf32> to vector<128x128xf32>
    %c127_i32 = arith.constant 127 : i32
    %11 = tpu.dynamic_rotate %10 by %c127_i32 dim 0 : vector<128x128xf32>, i32 -> vector<128x128xf32>
    %12 = arith.addf %9, %11 : vector<128x128xf32>
    %13 = vector.extract_strided_slice %8 {offsets = [0, 256], sizes = [128, 128], strides = [1, 1]} : vector<128x384xf32> to vector<128x128xf32>
    %c126_i32 = arith.constant 126 : i32
    %14 = tpu.dynamic_rotate %13 by %c126_i32 dim 0 : vector<128x128xf32>, i32 -> vector<128x128xf32>
    %15 = arith.addf %12, %14 : vector<128x128xf32>
    %c16_i32 = arith.constant 16 : i32
    %16 = arith.addi %0, %c16_i32 : i32
    %17 = tpu.assume_multiple %16, 8 : i32
    %c0_4 = arith.constant 0 : index
    %18 = arith.index_cast %17 : i32 to index
    %c0_5 = arith.constant 0 : index
    %19 = vector.load %arg2[%c0_4, %18, %c0_5] : memref<1x176x128xbf16, #tpu.memory_space<vmem>>, vector<1x128x128xbf16>
    %20 = vector.shape_cast %19 : vector<1x128x128xbf16> to vector<128x128xbf16>
    %c1 = arith.constant 1 : index
    %c0_6 = arith.constant 0 : index
    %c0_7 = arith.constant 0 : index
    %21 = vector.load %arg3[%c1, %c0_6, %c0_7] : memref<3x128x384xbf16, #tpu.memory_space<vmem>>, vector<1x128x384xbf16>
    %22 = vector.shape_cast %21 : vector<1x128x384xbf16> to vector<128x384xbf16>
    %cst_8 = arith.constant dense<0.000000e+00> : vector<128x384xf32>
    %23 = tpu.matmul %20, %22, %cst_8 {dimension_numbers = #tpu.dot_dimension_numbers<[1], [0], [0], [1], [0, 0, 1, 1], [], []>} : vector<128x128xbf16>, vector<128x384xbf16>, vector<128x384xf32> -> vector<128x384xf32>
    %24 = vector.extract_strided_slice %23 {offsets = [0, 0], sizes = [128, 128], strides = [1, 1]} : vector<128x384xf32> to vector<128x128xf32>
    %25 = vector.extract_strided_slice %23 {offsets = [0, 128], sizes = [128, 128], strides = [1, 1]} : vector<128x384xf32> to vector<128x128xf32>
    %c127_i32_9 = arith.constant 127 : i32
    %26 = tpu.dynamic_rotate %25 by %c127_i32_9 dim 0 : vector<128x128xf32>, i32 -> vector<128x128xf32>
    %27 = arith.addf %24, %26 : vector<128x128xf32>
    %28 = vector.extract_strided_slice %23 {offsets = [0, 256], sizes = [128, 128], strides = [1, 1]} : vector<128x384xf32> to vector<128x128xf32>
    %c126_i32_10 = arith.constant 126 : i32
    %29 = tpu.dynamic_rotate %28 by %c126_i32_10 dim 0 : vector<128x128xf32>, i32 -> vector<128x128xf32>
    %30 = arith.addf %27, %29 : vector<128x128xf32>
    %31 = arith.addf %15, %30 : vector<128x128xf32>
    %c32_i32 = arith.constant 32 : i32
    %32 = arith.addi %0, %c32_i32 : i32
    %33 = tpu.assume_multiple %32, 8 : i32
    %c0_11 = arith.constant 0 : index
    %34 = arith.index_cast %33 : i32 to index
    %c0_12 = arith.constant 0 : index
    %35 = vector.load %arg2[%c0_11, %34, %c0_12] : memref<1x176x128xbf16, #tpu.memory_space<vmem>>, vector<1x128x128xbf16>
    %36 = vector.shape_cast %35 : vector<1x128x128xbf16> to vector<128x128xbf16>
    %c2 = arith.constant 2 : index
    %c0_13 = arith.constant 0 : index
    %c0_14 = arith.constant 0 : index
    %37 = vector.load %arg3[%c2, %c0_13, %c0_14] : memref<3x128x384xbf16, #tpu.memory_space<vmem>>, vector<1x128x384xbf16>
    %38 = vector.shape_cast %37 : vector<1x128x384xbf16> to vector<128x384xbf16>
    %cst_15 = arith.constant dense<0.000000e+00> : vector<128x384xf32>
    %39 = tpu.matmul %36, %38, %cst_15 {dimension_numbers = #tpu.dot_dimension_numbers<[1], [0], [0], [1], [0, 0, 1, 1], [], []>} : vector<128x128xbf16>, vector<128x384xbf16>, vector<128x384xf32> -> vector<128x384xf32>
    %40 = vector.extract_strided_slice %39 {offsets = [0, 0], sizes = [128, 128], strides = [1, 1]} : vector<128x384xf32> to vector<128x128xf32>
    %41 = vector.extract_strided_slice %39 {offsets = [0, 128], sizes = [128, 128], strides = [1, 1]} : vector<128x384xf32> to vector<128x128xf32>
    %c127_i32_16 = arith.constant 127 : i32
    %42 = tpu.dynamic_rotate %41 by %c127_i32_16 dim 0 : vector<128x128xf32>, i32 -> vector<128x128xf32>
    %43 = arith.addf %40, %42 : vector<128x128xf32>
    %44 = vector.extract_strided_slice %39 {offsets = [0, 256], sizes = [128, 128], strides = [1, 1]} : vector<128x384xf32> to vector<128x128xf32>
    %c126_i32_17 = arith.constant 126 : i32
    %45 = tpu.dynamic_rotate %44 by %c126_i32_17 dim 0 : vector<128x128xf32>, i32 -> vector<128x128xf32>
    %46 = arith.addf %43, %45 : vector<128x128xf32>
    %47 = arith.addf %31, %46 : vector<128x128xf32>
    %c0_18 = arith.constant 0 : index
    %c0_19 = arith.constant 0 : index
    %48 = vector.load %arg4[%c0_18, %c0_19] : memref<1x128xf32, #tpu.memory_space<vmem>>, vector<1x128xf32>
    %49 = vector.broadcast %48 : vector<1x128xf32> to vector<128x128xf32>
    %50 = arith.addf %47, %49 : vector<128x128xf32>
    %c16_i32_20 = arith.constant 16 : i32
    %51 = arith.addi %0, %c16_i32_20 : i32
    %52 = tpu.assume_multiple %51, 8 : i32
    %c0_21 = arith.constant 0 : index
    %53 = arith.index_cast %52 : i32 to index
    %c0_22 = arith.constant 0 : index
    %54 = vector.load %arg5[%c0_21, %53, %c0_22] : memref<1x176x128xbf16, #tpu.memory_space<vmem>>, vector<1x128x128xbf16>
    %55 = vector.shape_cast %54 : vector<1x128x128xbf16> to vector<128x128xbf16>
    %56 = arith.extf %55 : vector<128x128xbf16> to vector<128x128xf32>
    %c127_i32_23 = arith.constant 127 : i32
    %57 = tpu.dynamic_rotate %56 by %c127_i32_23 dim 0 : vector<128x128xf32>, i32 -> vector<128x128xf32>
    %58 = arith.addf %50, %57 : vector<128x128xf32>
    %cst_24 = arith.constant 0.000000e+00 : f32
    %59 = vector.broadcast %cst_24 : f32 to vector<128x128xf32>
    %60 = arith.maximumf %58, %59 : vector<128x128xf32>
    %61 = arith.truncf %60 : vector<128x128xf32> to vector<128x128xbf16>
    %c0_25 = arith.constant 0 : index
    %c0_26 = arith.constant 0 : index
    %c0_27 = arith.constant 0 : index
    %62 = vector.load %arg6[%c0_25, %c0_26, %c0_27] : memref<1x128x128xbf16, #tpu.memory_space<vmem>>, vector<1x128x128xbf16>
    %63 = vector.shape_cast %62 : vector<1x128x128xbf16> to vector<128x128xbf16>
    %64 = vector.shape_cast %61 : vector<128x128xbf16> to vector<1x128x128xbf16>
    tpu.vector_store %arg6[%c0_25, %c0_26, %c0_27], %64 {strides = array<i32>} : memref<1x128x128xbf16, #tpu.memory_space<vmem>>, vector<1x128x128xbf16>,
    return
  }
  func.func @transform_0(%arg0: i32, %arg1: i32) -> (i32, i32, i32) {
    %c0_i32 = arith.constant 0 : i32
    %c0_i32_0 = arith.constant 0 : i32
    %c0_i32_1 = arith.constant 0 : i32
    return %arg0, %c0_i32, %c0_i32_0 : i32, i32, i32
  }
  func.func @transform_1(%arg0: i32, %arg1: i32) -> (i32, i32, i32) {
    %c0_i32 = arith.constant 0 : i32
    %c0_i32_0 = arith.constant 0 : i32
    %c0_i32_1 = arith.constant 0 : i32
    %c0_i32_2 = arith.constant 0 : i32
    return %c0_i32, %c0_i32_0, %c0_i32_1 : i32, i32, i32
  }
  func.func @transform_2(%arg0: i32, %arg1: i32) -> (i32, i32) {
    %c0_i32 = arith.constant 0 : i32
    %c0_i32_0 = arith.constant 0 : i32
    %c0_i32_1 = arith.constant 0 : i32
    return %c0_i32, %c0_i32_0 : i32, i32
  }
  func.func @transform_3(%arg0: i32, %arg1: i32) -> (i32, i32, i32) {
    %c0_i32 = arith.constant 0 : i32
    %c0_i32_0 = arith.constant 0 : i32
    %c0_i32_1 = arith.constant 0 : i32
    return %arg0, %c0_i32, %c0_i32_0 : i32, i32, i32
  }
  func.func @transform_4(%arg0: i32, %arg1: i32) -> (i32, i32, i32) {
    %c0_i32 = arith.constant 0 : i32
    %c0_i32_0 = arith.constant 0 : i32
    return %arg0, %arg1, %c0_i32 : i32, i32, i32
  }
}

</mosaic_0001>

<llo_original>
// kernel: tpu_custom_call.1
$region0: #{tpu_custom_call.1}
  #allocation0 [shape = 'u32[]', space=smem, size = 0x4, offset = 0x4, fixed_abs, tag = 'smem constant byte address 0x4 - core index']
  #allocation1 [shape = 'u32[144,128]{1,0:T(1,128)}', space=vmem, size = 0x12000, scoped, tag = 'internal scratch']
  %s0 = inlined_call_operand.hbm [shape: bf16[2,176,128], index: 0, kind: input, shape index: {}]
  %s1 = inlined_call_operand.hbm [shape: bf16[3,128,384], index: 1, kind: input, shape index: {}]
  %s2 = inlined_call_operand.vmem [shape: f32[1,128], index: 2, kind: input, shape index: {}]
  %s3 = inlined_call_operand.hbm [shape: bf16[2,176,128], index: 3, kind: input, shape index: {}]
  %s4 = inlined_call_operand.hbm [shape: bf16[2,128,128], index: 4, kind: output, shape index: {}]
  %s5 = sld [smem:[#allocation0]]
  $region61: #{tpu_custom_call.1} parent=0
    _
  %s7 = ssub.s32 1, %s5
  %s8 = scalar_select 0, %s7, %s5
  $region1: #{tpu_custom_call.1} parent=0
    #allocation2 [shape = 'u8[90112]{0}', space=vmem, size = 0x16000, scoped, tag = 'input window, operand 0']
    #allocation3 [shape = 's32[2]{0}', space=sflag, size = 0x8, scoped, tag = 'scoped memory for tpu_custom_call.1']
    #allocation4 [shape = 's32[2]{0}', space=sflag, size = 0x8, scoped, tag = 'scoped memory for tpu_custom_call.1']
    #allocation5 [shape = 'u8[294912]{0}', space=vmem, size = 0x48000, scoped, tag = 'input window, operand 1, single buffered']
    #allocation6 [shape = 's32[1]{0}', space=sflag, size = 0x4, scoped, tag = 'scoped memory for tpu_custom_call.1']
    #allocation7 [shape = 'u8[90112]{0}', space=vmem, size = 0x16000, scoped, tag = 'input window, operand 3']
    #allocation8 [shape = 'u8[65536]{0}', space=vmem, size = 0x10000, scoped, tag = 'output window, operand 0']
    %9 = vsyncpa [#allocation3], 0
    %s10 = scalar_lea.sflag [#allocation3], 1
    %11 = vsyncpa %s10, 0
    %12 = vsyncpa [#allocation6], 0
    %13 = vsyncpa [#allocation4], 0
    %s14 = scalar_lea.sflag [#allocation4], 1
    %15 = vsyncpa %s14, 0
    loop: start=0, step=1, limit=4
    $region2: #{tpu_custom_call.1} parent=1 // loop_pre_header
      _
    $region3: #{tpu_custom_call.1} parent=1 // loop_header
      %s17 = sphi 0, %s21
      %p18 = scmp.ge.s32.totalorder %s17, 4
      %s24 = sphi 0, %s36
      %s25 = sphi 0, %s32
      %s26 = sphi 0, %s24
      %s27 = sphi 0, %s25
      %s28 = sphi 0, %s26
      %s29 = sphi 0, %s27
      %s39 = sphi 0, %s41
      %s42 = sphi 0, %s39
      %s43 = sphi 0, %s42
      %s59 = sphi 0, %s43
      %s63 = sphi 0, %s63
      %s65 = sphi 0, %s63
      %s66 = sphi 0, %s65
      %s80 = sphi 0, %s66
      %s84 = sphi 0, %s84
      %s86 = sphi 0, %s84
      %s87 = sphi 0, %s86
      %s101 = sphi 0, %s87
      %s107 = sphi 0, %s109
      %s110 = sphi 0, %s107
      %s111 = sphi 0, %s110
      %s127 = sphi 0, %s111
      %s135 = sphi 0, %s137
      %s138 = sphi 0, %s135
      %s139 = sphi 0, %s138
      %s155 = sphi 0, %s139
    $region4: #{tpu_custom_call.1} parent=1 // loop_header_branch
      %20 = sbr.rel (%p18) target = $region8
    $region5: #{tpu_custom_call.1} parent=1 // loop_body
      %s22 = ssub.s32 %s17, 1
      %s23 = ssub.s32 %s17, 2
      %s30 = sadd.s32 1, %s25
      %p31 = scmp.ge.s32.totalorder %s30, 1
      %s32 = scalar_select %p31, 0, %s30
      %s33 = sadd.s32 1, %s24
      %s34 = scalar_select %p31, %s33, %s24
      %p35 = scmp.ge.s32.totalorder %s34, 2
      %s36 = scalar_select %p35, 0, %s34
      %s37 = ssub.s32 %s24, %s36
      %p38 = scmp.eq.s32.totalorder %s37, 0
      %s40 = sadd.s32 %s39, 1
      %s41 = scalar_select %p38, %s39, %s40
      %p44 = pneg %p38
      %p45 = scmp.eq.s32.totalorder %s17, 1
      %p46 = por %p44, %p45
      %p47 = scmp.ne.s32.totalorder %s39, %s42
      %p48 = scmp.eq.s32.totalorder %s17, 0
      %p49 = por %p47, %p48
      %p50 = scmp.ne.s32.totalorder %s39, %s42
      %p51 = scmp.eq.s32.totalorder %s22, 1
      %p52 = por %p50, %p51
      %p53 = scmp.ne.s32.totalorder %s42, %s43
      %p54 = scmp.eq.s32.totalorder %s22, 0
      %p55 = por %p53, %p54
      %p56 = scmp.ne.s32.totalorder %s42, %s43
      %p57 = scmp.eq.s32.totalorder %s23, 1
      %p58 = por %p56, %p57
      %p60 = scmp.ne.s32.totalorder %s43, %s59
      %p61 = scmp.eq.s32.totalorder %s23, 0
      %p62 = por %p60, %p61
      %s64 = sadd.s32 %s63, 1
      %p67 = scmp.eq.s32.totalorder %s17, 1
      %p68 = scmp.ne.s32.totalorder %s63, %s65
      %p69 = scmp.eq.s32.totalorder %s17, 0
      %p70 = por %p68, %p69
      %p71 = scmp.ne.s32.totalorder %s63, %s65
      %p72 = scmp.eq.s32.totalorder %s22, 1
      %p73 = por %p71, %p72
      %p74 = scmp.ne.s32.totalorder %s65, %s66
      %p75 = scmp.eq.s32.totalorder %s22, 0
      %p76 = por %p74, %p75
      %p77 = scmp.ne.s32.totalorder %s65, %s66
      %p78 = scmp.eq.s32.totalorder %s23, 1
      %p79 = por %p77, %p78
      %p81 = scmp.ne.s32.totalorder %s66, %s80
      %p82 = scmp.eq.s32.totalorder %s23, 0
      %p83 = por %p81, %p82
      %s85 = sadd.s32 %s84, 1
      %p88 = scmp.eq.s32.totalorder %s17, 1
      %p89 = scmp.ne.s32.totalorder %s84, %s86
      %p90 = scmp.eq.s32.totalorder %s17, 0
      %p91 = por %p89, %p90
      %p92 = scmp.ne.s32.totalorder %s84, %s86
      %p93 = scmp.eq.s32.totalorder %s22, 1
      %p94 = por %p92, %p93
      %p95 = scmp.ne.s32.totalorder %s86, %s87
      %p96 = scmp.eq.s32.totalorder %s22, 0
      %p97 = por %p95, %p96
      %p98 = scmp.ne.s32.totalorder %s86, %s87
      %p99 = scmp.eq.s32.totalorder %s23, 1
      %p100 = por %p98, %p99
      %p102 = scmp.ne.s32.totalorder %s87, %s101
      %p103 = scmp.eq.s32.totalorder %s23, 0
      %p104 = por %p102, %p103
      %s105 = ssub.s32 %s24, %s36
      %p106 = scmp.eq.s32.totalorder %s105, 0
      %s108 = sadd.s32 %s107, 1
      %s109 = scalar_select %p106, %s107, %s108
      %p112 = pneg %p106
      %p113 = scmp.eq.s32.totalorder %s17, 1
      %p114 = por %p112, %p113
      %p115 = scmp.ne.s32.totalorder %s107, %s110
      %p116 = scmp.eq.s32.totalorder %s17, 0
      %p117 = por %p115, %p116
      %p118 = scmp.ne.s32.totalorder %s107, %s110
      %p119 = scmp.eq.s32.totalorder %s22, 1
      %p120 = por %p118, %p119
      %p121 = scmp.ne.s32.totalorder %s110, %s111
      %p122 = scmp.eq.s32.totalorder %s22, 0
      %p123 = por %p121, %p122
      %p124 = scmp.ne.s32.totalorder %s110, %s111
      %p125 = scmp.eq.s32.totalorder %s23, 1
      %p126 = por %p124, %p125
      %p128 = scmp.ne.s32.totalorder %s111, %s127
      %p129 = scmp.eq.s32.totalorder %s23, 0
      %p130 = por %p128, %p129
      %s131 = ssub.s32 %s24, %s36
      %s132 = ssub.s32 %s25, %s32
      %s133 = sor.u32 %s131, %s132
      %p134 = scmp.eq.s32.totalorder %s133, 0
      %s136 = sadd.s32 %s135, 1
      %s137 = scalar_select %p134, %s135, %s136
      %p140 = pneg %p134
      %p141 = scmp.eq.s32.totalorder %s17, 1
      %p142 = por %p140, %p141
      %p143 = scmp.ne.s32.totalorder %s135, %s138
      %p144 = scmp.eq.s32.totalorder %s17, 0
      %p145 = por %p143, %p144
      %p146 = scmp.ne.s32.totalorder %s135, %s138
      %p147 = scmp.eq.s32.totalorder %s22, 1
      %p148 = por %p146, %p147
      %p149 = scmp.ne.s32.totalorder %s138, %s139
      %p150 = scmp.eq.s32.totalorder %s22, 0
      %p151 = por %p149, %p150
      %p152 = scmp.ne.s32.totalorder %s138, %s139
      %p153 = scmp.eq.s32.totalorder %s23, 1
      %p154 = por %p152, %p153
      %p156 = scmp.ne.s32.totalorder %s139, %s155
      %p157 = scmp.eq.s32.totalorder %s23, 0
      %p158 = por %p156, %p157
      %p159 = scmp.le.s32.totalorder 1, %s17
      %p160 = scmp.lt.s32.totalorder %s17, 3
      %p161 = pnand %p159, %p160
      %p162 = pneg %p161
      // Predicated region
      $region9: #{tpu_custom_call.1} parent=5 // pred_check
        _
      $region10: #{tpu_custom_call.1} parent=5 // pred_check_branch
        %164 = sbr.rel (%p161) target = $region12
      $region11: #{tpu_custom_call.1} parent=5 // pred_region
        %s165 = ssub.s32 %s17, 1
        // Predicated region
        $region13: #{tpu_custom_call.1} parent=11 // pred_check
          %p166 = pneg %p76
        $region14: #{tpu_custom_call.1} parent=11 // pred_check_branch
          %168 = sbr.rel (%p166) target = $region16
        $region15: #{tpu_custom_call.1} parent=11 // pred_region
          %s170 = ssub.s32 9216, 9216
          %171 = vsyncadd [#allocation6], %s170
          %s172 = sshll.u32 [#allocation5], 4
          %s173 = int_to_ptr.vmem [resolvable:$true] %s172
          %178 = dma.hbm_to_vmem [thread:$0]  %s1, 9216, %s173, [#allocation6], 192, 192, 12
        $region16: #{tpu_custom_call.1} parent=11 // pred_fallthru
          _
        // Predicated region
        $region17: #{tpu_custom_call.1} parent=11 // pred_check
          %p179 = pneg %p97
        $region18: #{tpu_custom_call.1} parent=11 // pred_check_branch
          %181 = sbr.rel (%p179) target = $region20
        $region19: #{tpu_custom_call.1} parent=11 // pred_region
          _
        $region20: #{tpu_custom_call.1} parent=11 // pred_fallthru
          _
      $region12: #{tpu_custom_call.1} parent=5 // pred_fallthru
        _
      %p182 = scmp.lt.s32.totalorder %s17, 2
      // Predicated region
      $region21: #{tpu_custom_call.1} parent=5 // pred_check
        %p183 = pneg %p182
      $region22: #{tpu_custom_call.1} parent=5 // pred_check_branch
        %185 = sbr.rel (%p183) target = $region24
      $region23: #{tpu_custom_call.1} parent=5 // pred_region
        // Predicated region
        $region25: #{tpu_custom_call.1} parent=23 // pred_check
          %p186 = pneg %p49
        $region26: #{tpu_custom_call.1} parent=23 // pred_check_branch
          %188 = sbr.rel (%p186) target = $region28
        $region27: #{tpu_custom_call.1} parent=23 // pred_region
          %s189 = sand.u32 %s17, 1
          %s190 = scalar_lea.sflag [#allocation3], %s189
          %s191 = sand.u32 %s39, 1
          %s192 = smul.addr %s191, 88
          %s193 = scalar_lea.vmem [#allocation2], %s192
          %s195 = ssub.s32 1408, 1408
          %196 = vsyncadd %s190, %s195
          %s197 = smul.addr %s24, 22
          %s198 = smul.addr %s197, 64
          %s199 = scalar_lea.hbm %s0, %s198
          %s200 = sshll.u32 %s193, 4
          %s201 = int_to_ptr.vmem [resolvable:$true] %s200
          %206 = dma.hbm_to_vmem [thread:$0]  %s199, 1408, %s201, %s190, 64, 64, 4
        $region28: #{tpu_custom_call.1} parent=23 // pred_fallthru
          _
        // Predicated region
        $region29: #{tpu_custom_call.1} parent=23 // pred_check
          %p207 = pneg %p117
        $region30: #{tpu_custom_call.1} parent=23 // pred_check_branch
          %209 = sbr.rel (%p207) target = $region32
        $region31: #{tpu_custom_call.1} parent=23 // pred_region
          %s210 = sand.u32 %s17, 1
          %s211 = scalar_lea.sflag [#allocation3], %s210
          %s212 = sand.u32 %s107, 1
          %s213 = smul.addr %s212, 88
          %s214 = scalar_lea.vmem [#allocation7], %s213
          %s216 = ssub.s32 1408, 1408
          %217 = vsyncadd %s211, %s216
          %s218 = smul.addr %s24, 22
          %s219 = smul.addr %s218, 64
          %s220 = scalar_lea.hbm %s3, %s219
          %s221 = sshll.u32 %s214, 4
          %s222 = int_to_ptr.vmem [resolvable:$true] %s221
          %227 = dma.hbm_to_vmem [thread:$0]  %s220, 1408, %s222, %s211, 64, 64, 4
        $region32: #{tpu_custom_call.1} parent=23 // pred_fallthru
          _
      $region24: #{tpu_custom_call.1} parent=5 // pred_fallthru
        _
      %p228 = scmp.le.s32.totalorder 1, %s17
      %p229 = scmp.lt.s32.totalorder %s17, 3
      %p230 = pnand %p228, %p229
      %p231 = pneg %p230
      // Predicated region
      $region33: #{tpu_custom_call.1} parent=5 // pred_check
        _
      $region34: #{tpu_custom_call.1} parent=5 // pred_check_branch
        %233 = sbr.rel (%p230) target = $region36
      $region35: #{tpu_custom_call.1} parent=5 // pred_region
        %s234 = ssub.s32 %s17, 1
        %s235 = sand.u32 %s22, 1
        %s236 = scalar_lea.sflag [#allocation3], %s235
        %s237 = sand.u32 %s42, 1
        %s238 = smul.addr %s237, 88
        %s239 = scalar_lea.vmem [#allocation2], %s238
        // Predicated region
        $region37: #{tpu_custom_call.1} parent=35 // pred_check
          %p240 = pneg %p55
        $region38: #{tpu_custom_call.1} parent=35 // pred_check_branch
          %242 = sbr.rel (%p240) target = $region40
        $region39: #{tpu_custom_call.1} parent=35 // pred_region
          %243 = dma.done %s236, 1408
        $region40: #{tpu_custom_call.1} parent=35 // pred_fallthru
          _
        // Predicated region
        $region41: #{tpu_custom_call.1} parent=35 // pred_check
          %p244 = pneg %p76
        $region42: #{tpu_custom_call.1} parent=35 // pred_check_branch
          %246 = sbr.rel (%p244) target = $region44
        $region43: #{tpu_custom_call.1} parent=35 // pred_region
          %247 = dma.done [#allocation6], 9216
        $region44: #{tpu_custom_call.1} parent=35 // pred_fallthru
          _
        %s248 = sand.u32 %s22, 1
        %s249 = scalar_lea.sflag [#allocation3], %s248
        %s250 = sand.u32 %s110, 1
        %s251 = smul.addr %s250, 88
        %s252 = scalar_lea.vmem [#allocation7], %s251
        // Predicated region
        $region45: #{tpu_custom_call.1} parent=35 // pred_check
          %p253 = pneg %p123
        $region46: #{tpu_custom_call.1} parent=35 // pred_check_branch
          %255 = sbr.rel (%p253) target = $region48
        $region47: #{tpu_custom_call.1} parent=35 // pred_region
          %256 = dma.done %s249, 1408
        $region48: #{tpu_custom_call.1} parent=35 // pred_fallthru
          _
        %s257 = sand.u32 %s22, 1
        %s258 = scalar_lea.sflag [#allocation3], %s257
        %s259 = sand.u32 %s42, 1
        %s260 = smul.addr %s259, 88
        %s261 = scalar_lea.vmem [#allocation2], %s260
        %p262 = pneg %p55
        %p263 = pneg %p52
        %p264 = pneg %p76
        %p265 = pneg %p73
        %p266 = pneg %p97
        %p267 = pneg %p94
        %s268 = sand.u32 %s22, 1
        %s269 = scalar_lea.sflag [#allocation3], %s268
        %s270 = sand.u32 %s110, 1
        %s271 = smul.addr %s270, 88
        %s272 = scalar_lea.vmem [#allocation7], %s271
        %p273 = pneg %p123
        %p274 = pneg %p120
        %p275 = pneg %p151
        %p276 = pneg %p148
        %s277 = sand.u32 %s138, 1
        %s278 = scalar_lea.sflag [#allocation4], %s277
        %s279 = sand.u32 %s138, 1
        %s280 = smul.addr %s279, 64
        %s281 = scalar_lea.vmem [#allocation8], %s280
        %s282 = smul.u32 16, %s27
        %s284 = smul.u32 %s27, 128
        %s285 = sshra.s32 %s284, 3
        %s286 = sand.u32 %s284, 7
        %s287 = smul.addr %s285, 4
        %s288 = scalar_lea.vmem %s239, %s287 [#allocation2]
        %v289 = vld [vmem:[%s288] sm:$0xf]
        %v290 = vld [vmem:[%s288 + $0x4] sm:$0xf]
        %v291 = vld [vmem:[%s288 + $0x8] sm:$0xf]
        %v292 = vld [vmem:[%s288 + $0xc] sm:$0xf]
        %v293 = vld [vmem:[%s288 + $0x10] sm:$0xf]
        %v294 = vld [vmem:[%s288 + $0x14] sm:$0xf]
        %v295 = vld [vmem:[%s288 + $0x18] sm:$0xf]
        %v296 = vld [vmem:[%s288 + $0x1c] sm:$0xf]
        %v297 = vld [vmem:[%s288 + $0x20] sm:$0xf]
        %v298 = vld [vmem:[%s288 + $0x24] sm:$0xf]
        %v299 = vld [vmem:[%s288 + $0x28] sm:$0xf]
        %v300 = vld [vmem:[%s288 + $0x2c] sm:$0xf]
        %v301 = vld [vmem:[%s288 + $0x30] sm:$0xf]
        %v302 = vld [vmem:[%s288 + $0x34] sm:$0xf]
        %v303 = vld [vmem:[%s288 + $0x38] sm:$0xf]
        %v304 = vld [vmem:[%s288 + $0x3c] sm:$0xf]
        %v305 = vld [vmem:[#allocation5] sm:$0xff]
        %v306 = vld [vmem:[#allocation5 + $0x8] sm:$0xf]
        %v307 = vld [vmem:[#allocation5 + $0xc] sm:$0xff]
        %v308 = vld [vmem:[#allocation5 + $0x14] sm:$0xf]
        %v309 = vld [vmem:[#allocation5 + $0x18] sm:$0xff]
        %v310 = vld [vmem:[#allocation5 + $0x20] sm:$0xf]
        %v311 = vld [vmem:[#allocation5 + $0x24] sm:$0xff]
        %v312 = vld [vmem:[#allocation5 + $0x2c] sm:$0xf]
        %v313 = vld [vmem:[#allocation5 + $0x30] sm:$0xff]
        %v314 = vld [vmem:[#allocation5 + $0x38] sm:$0xf]
        %v315 = vld [vmem:[#allocation5 + $0x3c] sm:$0xff]
        %v316 = vld [vmem:[#allocation5 + $0x44] sm:$0xf]
        %v317 = vld [vmem:[#allocation5 + $0x48] sm:$0xff]
        %v318 = vld [vmem:[#allocation5 + $0x50] sm:$0xf]
        %v319 = vld [vmem:[#allocation5 + $0x54] sm:$0xff]
        %v320 = vld [vmem:[#allocation5 + $0x5c] sm:$0xf]
        %v321 = vld [vmem:[#allocation5 + $0x60] sm:$0xff]
        %v322 = vld [vmem:[#allocation5 + $0x68] sm:$0xf]
        %v323 = vld [vmem:[#allocation5 + $0x6c] sm:$0xff]
        %v324 = vld [vmem:[#allocation5 + $0x74] sm:$0xf]
        %v325 = vld [vmem:[#allocation5 + $0x78] sm:$0xff]
        %v326 = vld [vmem:[#allocation5 + $0x80] sm:$0xf]
        %v327 = vld [vmem:[#allocation5 + $0x84] sm:$0xff]
        %v328 = vld [vmem:[#allocation5 + $0x8c] sm:$0xf]
        %v329 = vld [vmem:[#allocation5 + $0x90] sm:$0xff]
        %v330 = vld [vmem:[#allocation5 + $0x98] sm:$0xf]
        %v331 = vld [vmem:[#allocation5 + $0x9c] sm:$0xff]
        %v332 = vld [vmem:[#allocation5 + $0xa4] sm:$0xf]
        %v333 = vld [vmem:[#allocation5 + $0xa8] sm:$0xff]
        %v334 = vld [vmem:[#allocation5 + $0xb0] sm:$0xf]
        %v335 = vld [vmem:[#allocation5 + $0xb4] sm:$0xff]
        %v336 = vld [vmem:[#allocation5 + $0xbc] sm:$0xf]
        %v353 = vunpack.c.l.b16 %v289
        %v354 = vunpack.c.l.b16 %v290
        %v355 = vunpack.c.l.b16 %v291
        %v356 = vunpack.c.l.b16 %v292
        %v357 = vunpack.c.l.b16 %v293
        %v358 = vunpack.c.l.b16 %v294
        %v359 = vunpack.c.l.b16 %v295
        %v360 = vunpack.c.l.b16 %v296
        %v361 = vunpack.c.l.b16 %v297
        %v362 = vunpack.c.l.b16 %v298
        %v363 = vunpack.c.l.b16 %v299
        %v364 = vunpack.c.l.b16 %v300
        %v365 = vunpack.c.l.b16 %v301
        %v366 = vunpack.c.l.b16 %v302
        %v367 = vunpack.c.l.b16 %v303
        %v368 = vunpack.c.l.b16 %v304
        %v369 = vpack.c.b16 %v354, %v353
        %v370 = vpack.c.b16 %v356, %v355
        %v371 = vpack.c.b16 %v358, %v357
        %v372 = vpack.c.b16 %v360, %v359
        %v373 = vpack.c.b16 %v362, %v361
        %v374 = vpack.c.b16 %v364, %v363
        %v375 = vpack.c.b16 %v366, %v365
        %v376 = vpack.c.b16 %v368, %v367
        %v417 = vunpack.c.l.b16 %v305
        %v418 = vunpack.c.h.b16 %v305
        %v419 = vunpack.c.l.b16 %v306
        %v420 = vunpack.c.l.b16 %v307
        %v421 = vunpack.c.h.b16 %v307
        %v422 = vunpack.c.l.b16 %v308
        %v423 = vunpack.c.l.b16 %v309
        %v424 = vunpack.c.h.b16 %v309
        %v425 = vunpack.c.l.b16 %v310
        %v426 = vunpack.c.l.b16 %v311
        %v427 = vunpack.c.h.b16 %v311
        %v428 = vunpack.c.l.b16 %v312
        %v429 = vunpack.c.l.b16 %v313
        %v430 = vunpack.c.h.b16 %v313
        %v431 = vunpack.c.l.b16 %v314
        %v432 = vunpack.c.l.b16 %v315
        %v433 = vunpack.c.h.b16 %v315
        %v434 = vunpack.c.l.b16 %v316
        %v435 = vunpack.c.l.b16 %v317
        %v436 = vunpack.c.h.b16 %v317
        %v437 = vunpack.c.l.b16 %v318
        %v438 = vunpack.c.l.b16 %v319
        %v439 = vunpack.c.h.b16 %v319
        %v440 = vunpack.c.l.b16 %v320
        %v441 = vunpack.c.l.b16 %v321
        %v442 = vunpack.c.h.b16 %v321
        %v443 = vunpack.c.l.b16 %v322
        %v444 = vunpack.c.l.b16 %v323
        %v445 = vunpack.c.h.b16 %v323
        %v446 = vunpack.c.l.b16 %v324
        %v447 = vunpack.c.l.b16 %v325
        %v448 = vunpack.c.h.b16 %v325
        %v449 = vunpack.c.l.b16 %v326
        %v450 = vunpack.c.l.b16 %v327
        %v451 = vunpack.c.h.b16 %v327
        %v452 = vunpack.c.l.b16 %v328
        %v453 = vunpack.c.l.b16 %v329
        %v454 = vunpack.c.h.b16 %v329
        %v455 = vunpack.c.l.b16 %v330
        %v456 = vunpack.c.l.b16 %v331
        %v457 = vunpack.c.h.b16 %v331
        %v458 = vunpack.c.l.b16 %v332
        %v459 = vunpack.c.l.b16 %v333
        %v460 = vunpack.c.h.b16 %v333
        %v461 = vunpack.c.l.b16 %v334
        %v462 = vunpack.c.l.b16 %v335
        %v463 = vunpack.c.h.b16 %v335
        %v464 = vunpack.c.l.b16 %v336
        %v465 = vpack.c.b16 %v420, %v417
        %v466 = vpack.c.b16 %v421, %v418
        %v467 = vpack.c.b16 %v422, %v419
        %v468 = vpack.c.b16 %v426, %v423
        %v469 = vpack.c.b16 %v427, %v424
        %v470 = vpack.c.b16 %v428, %v425
        %v471 = vpack.c.b16 %v432, %v429
        %v472 = vpack.c.b16 %v433, %v430
        %v473 = vpack.c.b16 %v434, %v431
        %v474 = vpack.c.b16 %v438, %v435
        %v475 = vpack.c.b16 %v439, %v436
        %v476 = vpack.c.b16 %v440, %v437
        %v477 = vpack.c.b16 %v444, %v441
        %v478 = vpack.c.b16 %v445, %v442
        %v479 = vpack.c.b16 %v446, %v443
        %v480 = vpack.c.b16 %v450, %v447
        %v481 = vpack.c.b16 %v451, %v448
        %v482 = vpack.c.b16 %v452, %v449
        %v483 = vpack.c.b16 %v456, %v453
        %v484 = vpack.c.b16 %v457, %v454
        %v485 = vpack.c.b16 %v458, %v455
        %v486 = vpack.c.b16 %v462, %v459
        %v487 = vpack.c.b16 %v463, %v460
        %v488 = vpack.c.b16 %v464, %v461
        %513 = vmatprep.subr.bf16.mxu0 %v466
        %514 = vmatpush1.bf16.msra.mxu0 %v465
        %515 = vmatprep.subr.bf16.mxu0 %v469
        %516 = vmatpush1.bf16.msra.mxu0 %v468
        %517 = vmatprep.subr.bf16.mxu0 %v472
        %518 = vmatpush1.bf16.msra.mxu0 %v471
        %519 = vmatprep.subr.bf16.mxu0 %v475
        %520 = vmatpush1.bf16.msra.mxu0 %v474
        %521 = vmatprep.subr.bf16.mxu0 %v478
        %522 = vmatpush1.bf16.msra.mxu0 %v477
        %523 = vmatprep.subr.bf16.mxu0 %v481
        %524 = vmatpush1.bf16.msra.mxu0 %v480
        %525 = vmatprep.subr.bf16.mxu0 %v484
        %526 = vmatpush1.bf16.msra.mxu0 %v483
        %527 = vmatprep.subr.bf16.mxu0 %v487
        %528 = vmatpush1.bf16.msra.mxu0 %v486
        %529 = vmatprep.subr.bf16.mxu0 0
        %530 = vmatpush1.bf16.msra.mxu0 0
        %531 = vmatprep.subr.bf16.mxu0 0
        %532 = vmatpush1.bf16.msra.mxu0 0
        %533 = vmatprep.subr.bf16.mxu0 0
        %534 = vmatpush1.bf16.msra.mxu0 0
        %535 = vmatprep.subr.bf16.mxu0 0
        %536 = vmatpush1.bf16.msra.mxu0 0
        %537 = vmatprep.subr.bf16.mxu0 0
        %538 = vmatpush1.bf16.msra.mxu0 0
        %539 = vmatprep.subr.bf16.mxu0 0
        %540 = vmatpush1.bf16.msra.mxu0 0
        %541 = vmatprep.subr.bf16.mxu0 0
        %542 = vmatpush1.bf16.msra.mxu0 0
        %543 = vmatprep.subr.bf16.mxu0 0
        %544 = vmatpush1.bf16.msra.mxu0 0
        %545 = vmatprep.mubr.bf16.mxu0 0
        %546 = vmatmul.mubr.bf16.gmra.mrb[0].mxu0 %v369
        %v547 = vpop.f32.mrb[0].mxu0
        %v548 = vadd.f32 0.0, %v547
        %v549 = vpop.f32.mrb[0].mxu0
        %v550 = vadd.f32 0.0, %v549
        %v551 = vpop.f32.mrb[0].mxu0
        %v552 = vadd.f32 0.0, %v551
        %v553 = vpop.f32.mrb[0].mxu0
        %v554 = vadd.f32 0.0, %v553
        %555 = vmatprep.mubr.bf16.mxu0 0
        %556 = vmatmul.mubr.bf16.gmra.mrb[0].mxu0 %v370
        %v557 = vpop.f32.mrb[0].mxu0
        %v558 = vadd.f32 0.0, %v557
        %v559 = vpop.f32.mrb[0].mxu0
        %v560 = vadd.f32 0.0, %v559
        %v561 = vpop.f32.mrb[0].mxu0
        %v562 = vadd.f32 0.0, %v561
        %v563 = vpop.f32.mrb[0].mxu0
        %v564 = vadd.f32 0.0, %v563
        %565 = vmatprep.mubr.bf16.mxu0 0
        %566 = vmatmul.mubr.bf16.gmra.mrb[0].mxu0 %v371
        %v567 = vpop.f32.mrb[0].mxu0
        %v568 = vadd.f32 0.0, %v567
        %v569 = vpop.f32.mrb[0].mxu0
        %v570 = vadd.f32 0.0, %v569
        %v571 = vpop.f32.mrb[0].mxu0
        %v572 = vadd.f32 0.0, %v571
        %v573 = vpop.f32.mrb[0].mxu0
        %v574 = vadd.f32 0.0, %v573
        %575 = vmatprep.mubr.bf16.mxu0 0
        %576 = vmatmul.mubr.bf16.gmra.mrb[0].mxu0 %v372
        %v577 = vpop.f32.mrb[0].mxu0
        %v578 = vadd.f32 0.0, %v577
        %v579 = vpop.f32.mrb[0].mxu0
        %v580 = vadd.f32 0.0, %v579
        %v581 = vpop.f32.mrb[0].mxu0
        %v582 = vadd.f32 0.0, %v581
        %v583 = vpop.f32.mrb[0].mxu0
        %v584 = vadd.f32 0.0, %v583
        %585 = vmatprep.mubr.bf16.mxu0 0
        %586 = vmatmul.mubr.bf16.gmra.mrb[0].mxu0 %v373
        %v587 = vpop.f32.mrb[0].mxu0
        %v588 = vadd.f32 0.0, %v587
        %v589 = vpop.f32.mrb[0].mxu0
        %v590 = vadd.f32 0.0, %v589
        %v591 = vpop.f32.mrb[0].mxu0
        %v592 = vadd.f32 0.0, %v591
        %v593 = vpop.f32.mrb[0].mxu0
        %v594 = vadd.f32 0.0, %v593
        %595 = vmatprep.mubr.bf16.mxu0 0
        %596 = vmatmul.mubr.bf16.gmra.mrb[0].mxu0 %v374
        %v597 = vpop.f32.mrb[0].mxu0
        %v598 = vadd.f32 0.0, %v597
        %v599 = vpop.f32.mrb[0].mxu0
        %v600 = vadd.f32 0.0, %v599
        %v601 = vpop.f32.mrb[0].mxu0
        %v602 = vadd.f32 0.0, %v601
        %v603 = vpop.f32.mrb[0].mxu0
        %v604 = vadd.f32 0.0, %v603
        %605 = vmatprep.mubr.bf16.mxu0 0
        %606 = vmatmul.mubr.bf16.gmra.mrb[0].mxu0 %v375
        %v607 = vpop.f32.mrb[0].mxu0
        %v608 = vadd.f32 0.0, %v607
        %v609 = vpop.f32.mrb[0].mxu0
        %v610 = vadd.f32 0.0, %v609
        %v611 = vpop.f32.mrb[0].mxu0
        %v612 = vadd.f32 0.0, %v611
        %v613 = vpop.f32.mrb[0].mxu0
        %v614 = vadd.f32 0.0, %v613
        %615 = vmatprep.mubr.bf16.mxu0 0
        %616 = vmatmul.mubr.bf16.gmra.mrb[0].mxu0 %v376
        %v617 = vpop.f32.mrb[0].mxu0
        %v618 = vadd.f32 0.0, %v617
        %v619 = vpop.f32.mrb[0].mxu0
        %v620 = vadd.f32 0.0, %v619
        %v621 = vpop.f32.mrb[0].mxu0
        %v622 = vadd.f32 0.0, %v621
        %v623 = vpop.f32.mrb[0].mxu0
        %v624 = vadd.f32 0.0, %v623
        %625 = vdwg.mxu0
        %626 = vmatprep.subr.bf16.mxu0 0
        %627 = vmatpush1.bf16.msra.mxu0 %v467
        %628 = vmatprep.subr.bf16.mxu0 0
        %629 = vmatpush1.bf16.msra.mxu0 %v470
        %630 = vmatprep.subr.bf16.mxu0 0
        %631 = vmatpush1.bf16.msra.mxu0 %v473
        %632 = vmatprep.subr.bf16.mxu0 0
        %633 = vmatpush1.bf16.msra.mxu0 %v476
        %634 = vmatprep.subr.bf16.mxu0 0
        %635 = vmatpush1.bf16.msra.mxu0 %v479
        %636 = vmatprep.subr.bf16.mxu0 0
        %637 = vmatpush1.bf16.msra.mxu0 %v482
        %638 = vmatprep.subr.bf16.mxu0 0
        %639 = vmatpush1.bf16.msra.mxu0 %v485
        %640 = vmatprep.subr.bf16.mxu0 0
        %641 = vmatpush1.bf16.msra.mxu0 %v488
        %642 = vmatprep.subr.bf16.mxu0 0
        %643 = vmatpush1.bf16.msra.mxu0 0
        %644 = vmatprep.subr.bf16.mxu0 0
        %645 = vmatpush1.bf16.msra.mxu0 0
        %646 = vmatprep.subr.bf16.mxu0 0
        %647 = vmatpush1.bf16.msra.mxu0 0
        %648 = vmatprep.subr.bf16.mxu0 0
        %649 = vmatpush1.bf16.msra.mxu0 0
        %650 = vmatprep.subr.bf16.mxu0 0
        %651 = vmatpush1.bf16.msra.mxu0 0
        %652 = vmatprep.subr.bf16.mxu0 0
        %653 = vmatpush1.bf16.msra.mxu0 0
        %654 = vmatprep.subr.bf16.mxu0 0
        %655 = vmatpush1.bf16.msra.mxu0 0
        %656 = vmatprep.subr.bf16.mxu0 0
        %657 = vmatpush1.bf16.msra.mxu0 0
        %658 = vmatprep.mubr.bf16.mxu0 0
        %659 = vmatmul.mubr.bf16.gmra.mrb[0].mxu0 %v369
        %v660 = vpop.f32.mrb[0].mxu0
        %v661 = vadd.f32 0.0, %v660
        %v662 = vpop.f32.mrb[0].mxu0
        %v663 = vpop.f32.mrb[0].mxu0
        %v664 = vadd.f32 0.0, %v663
        %v665 = vpop.f32.mrb[0].mxu0
        %666 = vmatprep.mubr.bf16.mxu0 0
        %667 = vmatmul.mubr.bf16.gmra.mrb[0].mxu0 %v370
        %v668 = vpop.f32.mrb[0].mxu0
        %v669 = vadd.f32 0.0, %v668
        %v670 = vpop.f32.mrb[0].mxu0
        %v671 = vpop.f32.mrb[0].mxu0
        %v672 = vadd.f32 0.0, %v671
        %v673 = vpop.f32.mrb[0].mxu0
        %674 = vmatprep.mubr.bf16.mxu0 0
        %675 = vmatmul.mubr.bf16.gmra.mrb[0].mxu0 %v371
        %v676 = vpop.f32.mrb[0].mxu0
        %v677 = vadd.f32 0.0, %v676
        %v678 = vpop.f32.mrb[0].mxu0
        %v679 = vpop.f32.mrb[0].mxu0
        %v680 = vadd.f32 0.0, %v679
        %v681 = vpop.f32.mrb[0].mxu0
        %682 = vmatprep.mubr.bf16.mxu0 0
        %683 = vmatmul.mubr.bf16.gmra.mrb[0].mxu0 %v372
        %v684 = vpop.f32.mrb[0].mxu0
        %v685 = vadd.f32 0.0, %v684
        %v686 = vpop.f32.mrb[0].mxu0
        %v687 = vpop.f32.mrb[0].mxu0
        %v688 = vadd.f32 0.0, %v687
        %v689 = vpop.f32.mrb[0].mxu0
        %690 = vmatprep.mubr.bf16.mxu0 0
        %691 = vmatmul.mubr.bf16.gmra.mrb[0].mxu0 %v373
        %v692 = vpop.f32.mrb[0].mxu0
        %v693 = vadd.f32 0.0, %v692
        %v694 = vpop.f32.mrb[0].mxu0
        %v695 = vpop.f32.mrb[0].mxu0
        %v696 = vadd.f32 0.0, %v695
        %v697 = vpop.f32.mrb[0].mxu0
        %698 = vmatprep.mubr.bf16.mxu0 0
        %699 = vmatmul.mubr.bf16.gmra.mrb[0].mxu0 %v374
        %v700 = vpop.f32.mrb[0].mxu0
        %v701 = vadd.f32 0.0, %v700
        %v702 = vpop.f32.mrb[0].mxu0
        %v703 = vpop.f32.mrb[0].mxu0
        %v704 = vadd.f32 0.0, %v703
        %v705 = vpop.f32.mrb[0].mxu0
        %706 = vmatprep.mubr.bf16.mxu0 0
        %707 = vmatmul.mubr.bf16.gmra.mrb[0].mxu0 %v375
        %v708 = vpop.f32.mrb[0].mxu0
        %v709 = vadd.f32 0.0, %v708
        %v710 = vpop.f32.mrb[0].mxu0
        %v711 = vpop.f32.mrb[0].mxu0
        %v712 = vadd.f32 0.0, %v711
        %v713 = vpop.f32.mrb[0].mxu0
        %714 = vmatprep.mubr.bf16.mxu0 0
        %715 = vmatmul.mubr.bf16.gmra.mrb[0].mxu0 %v376
        %v716 = vpop.f32.mrb[0].mxu0
        %v717 = vadd.f32 0.0, %v716
        %v718 = vpop.f32.mrb[0].mxu0
        %v719 = vpop.f32.mrb[0].mxu0
        %v720 = vadd.f32 0.0, %v719
        %v721 = vpop.f32.mrb[0].mxu0
        %722 = vdwg.mxu0
        %v723 = vrot.slane %v550, 1
        %v724 = vrot.slane %v554, 1
        %v725 = vrot.slane %v560, 1
        %v726 = vrot.slane %v564, 1
        %v727 = vrot.slane %v570, 1
        %v728 = vrot.slane %v574, 1
        %v729 = vrot.slane %v580, 1
        %v730 = vrot.slane %v584, 1
        %v731 = vrot.slane %v590, 1
        %v732 = vrot.slane %v594, 1
        %v733 = vrot.slane %v600, 1
        %v734 = vrot.slane %v604, 1
        %v735 = vrot.slane %v610, 1
        %v736 = vrot.slane %v614, 1
        %v737 = vrot.slane %v620, 1
        %v738 = vrot.slane %v624, 1
        %v739 = vlaneseq
        %v740 = vshrl.u32 %v739, 7
        %vm741 = vcmp.lt.s32.totalorder %v740, 7
        %v742 = vsel %vm741, %v737, %v738
        %v743 = vsel %vm741, %v736, %v737
        %v744 = vsel %vm741, %v735, %v736
        %v745 = vsel %vm741, %v734, %v735
        %v746 = vsel %vm741, %v733, %v734
        %v747 = vsel %vm741, %v732, %v733
        %v748 = vsel %vm741, %v731, %v732
        %v749 = vsel %vm741, %v730, %v731
        %v750 = vsel %vm741, %v729, %v730
        %v751 = vsel %vm741, %v728, %v729
        %v752 = vsel %vm741, %v727, %v728
        %v753 = vsel %vm741, %v726, %v727
        %v754 = vsel %vm741, %v725, %v726
        %v755 = vsel %vm741, %v724, %v725
        %v756 = vsel %vm741, %v723, %v724
        %v757 = vsel %vm741, %v738, %v723
        %v758 = vadd.f32 %v548, %v756
        %v759 = vadd.f32 %v552, %v755
        %v760 = vadd.f32 %v558, %v754
        %v761 = vadd.f32 %v562, %v753
        %v762 = vadd.f32 %v568, %v752
        %v763 = vadd.f32 %v572, %v751
        %v764 = vadd.f32 %v578, %v750
        %v765 = vadd.f32 %v582, %v749
        %v766 = vadd.f32 %v588, %v748
        %v767 = vadd.f32 %v592, %v747
        %v768 = vadd.f32 %v598, %v746
        %v769 = vadd.f32 %v602, %v745
        %v770 = vadd.f32 %v608, %v744
        %v771 = vadd.f32 %v612, %v743
        %v772 = vadd.f32 %v618, %v742
        %v773 = vadd.f32 %v622, %v757
        %v774 = vrot.slane %v661, 2
        %v775 = vrot.slane %v664, 2
        %v776 = vrot.slane %v669, 2
        %v777 = vrot.slane %v672, 2
        %v778 = vrot.slane %v677, 2
        %v779 = vrot.slane %v680, 2
        %v780 = vrot.slane %v685, 2
        %v781 = vrot.slane %v688, 2
        %v782 = vrot.slane %v693, 2
        %v783 = vrot.slane %v696, 2
        %v784 = vrot.slane %v701, 2
        %v785 = vrot.slane %v704, 2
        %v786 = vrot.slane %v709, 2
        %v787 = vrot.slane %v712, 2
        %v788 = vrot.slane %v717, 2
        %v789 = vrot.slane %v720, 2
        %vm790 = vcmp.lt.s32.totalorder %v740, 6
        %v791 = vsel %vm790, %v788, %v789
        %v792 = vsel %vm790, %v787, %v788
        %v793 = vsel %vm790, %v786, %v787
        %v794 = vsel %vm790, %v785, %v786
        %v795 = vsel %vm790, %v784, %v785
        %v796 = vsel %vm790, %v783, %v784
        %v797 = vsel %vm790, %v782, %v783
        %v798 = vsel %vm790, %v781, %v782
        %v799 = vsel %vm790, %v780, %v781
        %v800 = vsel %vm790, %v779, %v780
        %v801 = vsel %vm790, %v778, %v779
        %v802 = vsel %vm790, %v777, %v778
        %v803 = vsel %vm790, %v776, %v777
        %v804 = vsel %vm790, %v775, %v776
        %v805 = vsel %vm790, %v774, %v775
        %v806 = vsel %vm790, %v789, %v774
        %v807 = vadd.f32 %v758, %v805
        %v808 = vadd.f32 %v759, %v804
        %v809 = vadd.f32 %v760, %v803
        %v810 = vadd.f32 %v761, %v802
        %v811 = vadd.f32 %v762, %v801
        %v812 = vadd.f32 %v763, %v800
        %v813 = vadd.f32 %v764, %v799
        %v814 = vadd.f32 %v765, %v798
        %v815 = vadd.f32 %v766, %v797
        %v816 = vadd.f32 %v767, %v796
        %v817 = vadd.f32 %v768, %v795
        %v818 = vadd.f32 %v769, %v794
        %v819 = vadd.f32 %v770, %v793
        %v820 = vadd.f32 %v771, %v792
        %v821 = vadd.f32 %v772, %v791
        %v822 = vadd.f32 %v773, %v806
        %s823 = sadd.s32 %s284, 16
        %s824 = sshra.s32 %s823, 3
        %s825 = sand.u32 %s823, 7
        %s826 = smul.addr %s824, 4
        %s827 = scalar_lea.vmem %s239, %s826 [#allocation2]
        %v828 = vld [vmem:[%s827] sm:$0xf]
        %v829 = vld [vmem:[%s827 + $0x4] sm:$0xf]
        %v830 = vld [vmem:[%s827 + $0x8] sm:$0xf]
        %v831 = vld [vmem:[%s827 + $0xc] sm:$0xf]
        %v832 = vld [vmem:[%s827 + $0x10] sm:$0xf]
        %v833 = vld [vmem:[%s827 + $0x14] sm:$0xf]
        %v834 = vld [vmem:[%s827 + $0x18] sm:$0xf]
        %v835 = vld [vmem:[%s827 + $0x1c] sm:$0xf]
        %v836 = vld [vmem:[%s827 + $0x20] sm:$0xf]
        %v837 = vld [vmem:[%s827 + $0x24] sm:$0xf]
        %v838 = vld [vmem:[%s827 + $0x28] sm:$0xf]
        %v839 = vld [vmem:[%s827 + $0x2c] sm:$0xf]
        %v840 = vld [vmem:[%s827 + $0x30] sm:$0xf]
        %v841 = vld [vmem:[%s827 + $0x34] sm:$0xf]
        %v842 = vld [vmem:[%s827 + $0x38] sm:$0xf]
        %v843 = vld [vmem:[%s827 + $0x3c] sm:$0xf]
        %s844 = scalar_lea.vmem [#allocation5], 192
        %v845 = vld [vmem:[%s844] sm:$0xff]
        %v846 = vld [vmem:[%s844 + $0x8] sm:$0xf]
        %v847 = vld [vmem:[%s844 + $0xc] sm:$0xff]
        %v848 = vld [vmem:[%s844 + $0x14] sm:$0xf]
        %v849 = vld [vmem:[%s844 + $0x18] sm:$0xff]
        %v850 = vld [vmem:[%s844 + $0x20] sm:$0xf]
        %v851 = vld [vmem:[%s844 + $0x24] sm:$0xff]
        %v852 = vld [vmem:[%s844 + $0x2c] sm:$0xf]
        %v853 = vld [vmem:[%s844 + $0x30] sm:$0xff]
        %v854 = vld [vmem:[%s844 + $0x38] sm:$0xf]
        %v855 = vld [vmem:[%s844 + $0x3c] sm:$0xff]
        %v856 = vld [vmem:[%s844 + $0x44] sm:$0xf]
        %v857 = vld [vmem:[%s844 + $0x48] sm:$0xff]
        %v858 = vld [vmem:[%s844 + $0x50] sm:$0xf]
        %v859 = vld [vmem:[%s844 + $0x54] sm:$0xff]
        %v860 = vld [vmem:[%s844 + $0x5c] sm:$0xf]
        %v861 = vld [vmem:[%s844 + $0x60] sm:$0xff]
        %v862 = vld [vmem:[%s844 + $0x68] sm:$0xf]
        %v863 = vld [vmem:[%s844 + $0x6c] sm:$0xff]
        %v864 = vld [vmem:[%s844 + $0x74] sm:$0xf]
        %v865 = vld [vmem:[%s844 + $0x78] sm:$0xff]
        %v866 = vld [vmem:[%s844 + $0x80] sm:$0xf]
        %v867 = vld [vmem:[%s844 + $0x84] sm:$0xff]
        %v868 = vld [vmem:[%s844 + $0x8c] sm:$0xf]
        %v869 = vld [vmem:[%s844 + $0x90] sm:$0xff]
        %v870 = vld [vmem:[%s844 + $0x98] sm:$0xf]
        %v871 = vld [vmem:[%s844 + $0x9c] sm:$0xff]
        %v872 = vld [vmem:[%s844 + $0xa4] sm:$0xf]
        %v873 = vld [vmem:[%s844 + $0xa8] sm:$0xff]
        %v874 = vld [vmem:[%s844 + $0xb0] sm:$0xf]
        %v875 = vld [vmem:[%s844 + $0xb4] sm:$0xff]
        %v876 = vld [vmem:[%s844 + $0xbc] sm:$0xf]
        %v893 = vunpack.c.l.b16 %v828
        %v894 = vunpack.c.l.b16 %v829
        %v895 = vunpack.c.l.b16 %v830
        %v896 = vunpack.c.l.b16 %v831
        %v897 = vunpack.c.l.b16 %v832
        %v898 = vunpack.c.l.b16 %v833
        %v899 = vunpack.c.l.b16 %v834
        %v900 = vunpack.c.l.b16 %v835
        %v901 = vunpack.c.l.b16 %v836
        %v902 = vunpack.c.l.b16 %v837
        %v903 = vunpack.c.l.b16 %v838
        %v904 = vunpack.c.l.b16 %v839
        %v905 = vunpack.c.l.b16 %v840
        %v906 = vunpack.c.l.b16 %v841
        %v907 = vunpack.c.l.b16 %v842
        %v908 = vunpack.c.l.b16 %v843
        %v909 = vpack.c.b16 %v894, %v893
        %v910 = vpack.c.b16 %v896, %v895
        %v911 = vpack.c.b16 %v898, %v897
        %v912 = vpack.c.b16 %v900, %v899
        %v913 = vpack.c.b16 %v902, %v901
        %v914 = vpack.c.b16 %v904, %v903
        %v915 = vpack.c.b16 %v906, %v905
        %v916 = vpack.c.b16 %v908, %v907
        %v957 = vunpack.c.l.b16 %v845
        %v958 = vunpack.c.h.b16 %v845
        %v959 = vunpack.c.l.b16 %v846
        %v960 = vunpack.c.l.b16 %v847
        %v961 = vunpack.c.h.b16 %v847
        %v962 = vunpack.c.l.b16 %v848
        %v963 = vunpack.c.l.b16 %v849
        %v964 = vunpack.c.h.b16 %v849
        %v965 = vunpack.c.l.b16 %v850
        %v966 = vunpack.c.l.b16 %v851
        %v967 = vunpack.c.h.b16 %v851
        %v968 = vunpack.c.l.b16 %v852
        %v969 = vunpack.c.l.b16 %v853
        %v970 = vunpack.c.h.b16 %v853
        %v971 = vunpack.c.l.b16 %v854
        %v972 = vunpack.c.l.b16 %v855
        %v973 = vunpack.c.h.b16 %v855
        %v974 = vunpack.c.l.b16 %v856
        %v975 = vunpack.c.l.b16 %v857
        %v976 = vunpack.c.h.b16 %v857
        %v977 = vunpack.c.l.b16 %v858
        %v978 = vunpack.c.l.b16 %v859
        %v979 = vunpack.c.h.b16 %v859
        %v980 = vunpack.c.l.b16 %v860
        %v981 = vunpack.c.l.b16 %v861
        %v982 = vunpack.c.h.b16 %v861
        %v983 = vunpack.c.l.b16 %v862
        %v984 = vunpack.c.l.b16 %v863
        %v985 = vunpack.c.h.b16 %v863
        %v986 = vunpack.c.l.b16 %v864
        %v987 = vunpack.c.l.b16 %v865
        %v988 = vunpack.c.h.b16 %v865
        %v989 = vunpack.c.l.b16 %v866
        %v990 = vunpack.c.l.b16 %v867
        %v991 = vunpack.c.h.b16 %v867
        %v992 = vunpack.c.l.b16 %v868
        %v993 = vunpack.c.l.b16 %v869
        %v994 = vunpack.c.h.b16 %v869
        %v995 = vunpack.c.l.b16 %v870
        %v996 = vunpack.c.l.b16 %v871
        %v997 = vunpack.c.h.b16 %v871
        %v998 = vunpack.c.l.b16 %v872
        %v999 = vunpack.c.l.b16 %v873
        %v1000 = vunpack.c.h.b16 %v873
        %v1001 = vunpack.c.l.b16 %v874
        %v1002 = vunpack.c.l.b16 %v875
        %v1003 = vunpack.c.h.b16 %v875
        %v1004 = vunpack.c.l.b16 %v876
        %v1005 = vpack.c.b16 %v960, %v957
        %v1006 = vpack.c.b16 %v961, %v958
        %v1007 = vpack.c.b16 %v962, %v959
        %v1008 = vpack.c.b16 %v966, %v963
        %v1009 = vpack.c.b16 %v967, %v964
        %v1010 = vpack.c.b16 %v968, %v965
        %v1011 = vpack.c.b16 %v972, %v969
        %v1012 = vpack.c.b16 %v973, %v970
        %v1013 = vpack.c.b16 %v974, %v971
        %v1014 = vpack.c.b16 %v978, %v975
        %v1015 = vpack.c.b16 %v979, %v976
        %v1016 = vpack.c.b16 %v980, %v977
        %v1017 = vpack.c.b16 %v984, %v981
        %v1018 = vpack.c.b16 %v985, %v982
        %v1019 = vpack.c.b16 %v986, %v983
        %v1020 = vpack.c.b16 %v990, %v987
        %v1021 = vpack.c.b16 %v991, %v988
        %v1022 = vpack.c.b16 %v992, %v989
        %v1023 = vpack.c.b16 %v996, %v993
        %v1024 = vpack.c.b16 %v997, %v994
        %v1025 = vpack.c.b16 %v998, %v995
        %v1026 = vpack.c.b16 %v1002, %v999
        %v1027 = vpack.c.b16 %v1003, %v1000
        %v1028 = vpack.c.b16 %v1004, %v1001
        %1053 = vmatprep.subr.bf16.mxu0 %v1006
        %1054 = vmatpush1.bf16.msra.mxu0 %v1005
        %1055 = vmatprep.subr.bf16.mxu0 %v1009
        %1056 = vmatpush1.bf16.msra.mxu0 %v1008
        %1057 = vmatprep.subr.bf16.mxu0 %v1012
        %1058 = vmatpush1.bf16.msra.mxu0 %v1011
        %1059 = vmatprep.subr.bf16.mxu0 %v1015
        %1060 = vmatpush1.bf16.msra.mxu0 %v1014
        %1061 = vmatprep.subr.bf16.mxu0 %v1018
        %1062 = vmatpush1.bf16.msra.mxu0 %v1017
        %1063 = vmatprep.subr.bf16.mxu0 %v1021
        %1064 = vmatpush1.bf16.msra.mxu0 %v1020
        %1065 = vmatprep.subr.bf16.mxu0 %v1024
        %1066 = vmatpush1.bf16.msra.mxu0 %v1023
        %1067 = vmatprep.subr.bf16.mxu0 %v1027
        %1068 = vmatpush1.bf16.msra.mxu0 %v1026
        %1069 = vmatprep.subr.bf16.mxu0 0
        %1070 = vmatpush1.bf16.msra.mxu0 0
        %1071 = vmatprep.subr.bf16.mxu0 0
        %1072 = vmatpush1.bf16.msra.mxu0 0
        %1073 = vmatprep.subr.bf16.mxu0 0
        %1074 = vmatpush1.bf16.msra.mxu0 0
        %1075 = vmatprep.subr.bf16.mxu0 0
        %1076 = vmatpush1.bf16.msra.mxu0 0
        %1077 = vmatprep.subr.bf16.mxu0 0
        %1078 = vmatpush1.bf16.msra.mxu0 0
        %1079 = vmatprep.subr.bf16.mxu0 0
        %1080 = vmatpush1.bf16.msra.mxu0 0
        %1081 = vmatprep.subr.bf16.mxu0 0
        %1082 = vmatpush1.bf16.msra.mxu0 0
        %1083 = vmatprep.subr.bf16.mxu0 0
        %1084 = vmatpush1.bf16.msra.mxu0 0
        %1085 = vmatprep.mubr.bf16.mxu0 0
        %1086 = vmatmul.mubr.bf16.gmra.mrb[0].mxu0 %v909
        %v1087 = vpop.f32.mrb[0].mxu0
        %v1088 = vadd.f32 0.0, %v1087
        %v1089 = vpop.f32.mrb[0].mxu0
        %v1090 = vadd.f32 0.0, %v1089
        %v1091 = vpop.f32.mrb[0].mxu0
        %v1092 = vadd.f32 0.0, %v1091
        %v1093 = vpop.f32.mrb[0].mxu0
        %v1094 = vadd.f32 0.0, %v1093
        %1095 = vmatprep.mubr.bf16.mxu0 0
        %1096 = vmatmul.mubr.bf16.gmra.mrb[0].mxu0 %v910
        %v1097 = vpop.f32.mrb[0].mxu0
        %v1098 = vadd.f32 0.0, %v1097
        %v1099 = vpop.f32.mrb[0].mxu0
        %v1100 = vadd.f32 0.0, %v1099
        %v1101 = vpop.f32.mrb[0].mxu0
        %v1102 = vadd.f32 0.0, %v1101
        %v1103 = vpop.f32.mrb[0].mxu0
        %v1104 = vadd.f32 0.0, %v1103
        %1105 = vmatprep.mubr.bf16.mxu0 0
        %1106 = vmatmul.mubr.bf16.gmra.mrb[0].mxu0 %v911
        %v1107 = vpop.f32.mrb[0].mxu0
        %v1108 = vadd.f32 0.0, %v1107
        %v1109 = vpop.f32.mrb[0].mxu0
        %v1110 = vadd.f32 0.0, %v1109
        %v1111 = vpop.f32.mrb[0].mxu0
        %v1112 = vadd.f32 0.0, %v1111
        %v1113 = vpop.f32.mrb[0].mxu0
        %v1114 = vadd.f32 0.0, %v1113
        %1115 = vmatprep.mubr.bf16.mxu0 0
        %1116 = vmatmul.mubr.bf16.gmra.mrb[0].mxu0 %v912
        %v1117 = vpop.f32.mrb[0].mxu0
        %v1118 = vadd.f32 0.0, %v1117
        %v1119 = vpop.f32.mrb[0].mxu0
        %v1120 = vadd.f32 0.0, %v1119
        %v1121 = vpop.f32.mrb[0].mxu0
        %v1122 = vadd.f32 0.0, %v1121
        %v1123 = vpop.f32.mrb[0].mxu0
        %v1124 = vadd.f32 0.0, %v1123
        %1125 = vmatprep.mubr.bf16.mxu0 0
        %1126 = vmatmul.mubr.bf16.gmra.mrb[0].mxu0 %v913
        %v1127 = vpop.f32.mrb[0].mxu0
        %v1128 = vadd.f32 0.0, %v1127
        %v1129 = vpop.f32.mrb[0].mxu0
        %v1130 = vadd.f32 0.0, %v1129
        %v1131 = vpop.f32.mrb[0].mxu0
        %v1132 = vadd.f32 0.0, %v1131
        %v1133 = vpop.f32.mrb[0].mxu0
        %v1134 = vadd.f32 0.0, %v1133
        %1135 = vmatprep.mubr.bf16.mxu0 0
        %1136 = vmatmul.mubr.bf16.gmra.mrb[0].mxu0 %v914
        %v1137 = vpop.f32.mrb[0].mxu0
        %v1138 = vadd.f32 0.0, %v1137
        %v1139 = vpop.f32.mrb[0].mxu0
        %v1140 = vadd.f32 0.0, %v1139
        %v1141 = vpop.f32.mrb[0].mxu0
        %v1142 = vadd.f32 0.0, %v1141
        %v1143 = vpop.f32.mrb[0].mxu0
        %v1144 = vadd.f32 0.0, %v1143
        %1145 = vmatprep.mubr.bf16.mxu0 0
        %1146 = vmatmul.mubr.bf16.gmra.mrb[0].mxu0 %v915
        %v1147 = vpop.f32.mrb[0].mxu0
        %v1148 = vadd.f32 0.0, %v1147
        %v1149 = vpop.f32.mrb[0].mxu0
        %v1150 = vadd.f32 0.0, %v1149
        %v1151 = vpop.f32.mrb[0].mxu0
        %v1152 = vadd.f32 0.0, %v1151
        %v1153 = vpop.f32.mrb[0].mxu0
        %v1154 = vadd.f32 0.0, %v1153
        %1155 = vmatprep.mubr.bf16.mxu0 0
        %1156 = vmatmul.mubr.bf16.gmra.mrb[0].mxu0 %v916
        %v1157 = vpop.f32.mrb[0].mxu0
        %v1158 = vadd.f32 0.0, %v1157
        %v1159 = vpop.f32.mrb[0].mxu0
        %v1160 = vadd.f32 0.0, %v1159
        %v1161 = vpop.f32.mrb[0].mxu0
        %v1162 = vadd.f32 0.0, %v1161
        %v1163 = vpop.f32.mrb[0].mxu0
        %v1164 = vadd.f32 0.0, %v1163
        %1165 = vdwg.mxu0
        %1166 = vmatprep.subr.bf16.mxu0 0
        %1167 = vmatpush1.bf16.msra.mxu0 %v1007
        %1168 = vmatprep.subr.bf16.mxu0 0
        %1169 = vmatpush1.bf16.msra.mxu0 %v1010
        %1170 = vmatprep.subr.bf16.mxu0 0
        %1171 = vmatpush1.bf16.msra.mxu0 %v1013
        %1172 = vmatprep.subr.bf16.mxu0 0
        %1173 = vmatpush1.bf16.msra.mxu0 %v1016
        %1174 = vmatprep.subr.bf16.mxu0 0
        %1175 = vmatpush1.bf16.msra.mxu0 %v1019
        %1176 = vmatprep.subr.bf16.mxu0 0
        %1177 = vmatpush1.bf16.msra.mxu0 %v1022
        %1178 = vmatprep.subr.bf16.mxu0 0
        %1179 = vmatpush1.bf16.msra.mxu0 %v1025
        %1180 = vmatprep.subr.bf16.mxu0 0
        %1181 = vmatpush1.bf16.msra.mxu0 %v1028
        %1182 = vmatprep.subr.bf16.mxu0 0
        %1183 = vmatpush1.bf16.msra.mxu0 0
        %1184 = vmatprep.subr.bf16.mxu0 0
        %1185 = vmatpush1.bf16.msra.mxu0 0
        %1186 = vmatprep.subr.bf16.mxu0 0
        %1187 = vmatpush1.bf16.msra.mxu0 0
        %1188 = vmatprep.subr.bf16.mxu0 0
        %1189 = vmatpush1.bf16.msra.mxu0 0
        %1190 = vmatprep.subr.bf16.mxu0 0
        %1191 = vmatpush1.bf16.msra.mxu0 0
        %1192 = vmatprep.subr.bf16.mxu0 0
        %1193 = vmatpush1.bf16.msra.mxu0 0
        %1194 = vmatprep.subr.bf16.mxu0 0
        %1195 = vmatpush1.bf16.msra.mxu0 0
        %1196 = vmatprep.subr.bf16.mxu0 0
        %1197 = vmatpush1.bf16.msra.mxu0 0
        %1198 = vmatprep.mubr.bf16.mxu0 0
        %1199 = vmatmul.mubr.bf16.gmra.mrb[0].mxu0 %v909
        %v1200 = vpop.f32.mrb[0].mxu0
        %v1201 = vadd.f32 0.0, %v1200
        %v1202 = vpop.f32.mrb[0].mxu0
        %v1203 = vpop.f32.mrb[0].mxu0
        %v1204 = vadd.f32 0.0, %v1203
        %v1205 = vpop.f32.mrb[0].mxu0
        %1206 = vmatprep.mubr.bf16.mxu0 0
        %1207 = vmatmul.mubr.bf16.gmra.mrb[0].mxu0 %v910
        %v1208 = vpop.f32.mrb[0].mxu0
        %v1209 = vadd.f32 0.0, %v1208
        %v1210 = vpop.f32.mrb[0].mxu0
        %v1211 = vpop.f32.mrb[0].mxu0
        %v1212 = vadd.f32 0.0, %v1211
        %v1213 = vpop.f32.mrb[0].mxu0
        %1214 = vmatprep.mubr.bf16.mxu0 0
        %1215 = vmatmul.mubr.bf16.gmra.mrb[0].mxu0 %v911
        %v1216 = vpop.f32.mrb[0].mxu0
        %v1217 = vadd.f32 0.0, %v1216
        %v1218 = vpop.f32.mrb[0].mxu0
        %v1219 = vpop.f32.mrb[0].mxu0
        %v1220 = vadd.f32 0.0, %v1219
        %v1221 = vpop.f32.mrb[0].mxu0
        %1222 = vmatprep.mubr.bf16.mxu0 0
        %1223 = vmatmul.mubr.bf16.gmra.mrb[0].mxu0 %v912
        %v1224 = vpop.f32.mrb[0].mxu0
        %v1225 = vadd.f32 0.0, %v1224
        %v1226 = vpop.f32.mrb[0].mxu0
        %v1227 = vpop.f32.mrb[0].mxu0
        %v1228 = vadd.f32 0.0, %v1227
        %v1229 = vpop.f32.mrb[0].mxu0
        %1230 = vmatprep.mubr.bf16.mxu0 0
        %1231 = vmatmul.mubr.bf16.gmra.mrb[0].mxu0 %v913
        %v1232 = vpop.f32.mrb[0].mxu0
        %v1233 = vadd.f32 0.0, %v1232
        %v1234 = vpop.f32.mrb[0].mxu0
        %v1235 = vpop.f32.mrb[0].mxu0
        %v1236 = vadd.f32 0.0, %v1235
        %v1237 = vpop.f32.mrb[0].mxu0
        %1238 = vmatprep.mubr.bf16.mxu0 0
        %1239 = vmatmul.mubr.bf16.gmra.mrb[0].mxu0 %v914
        %v1240 = vpop.f32.mrb[0].mxu0
        %v1241 = vadd.f32 0.0, %v1240
        %v1242 = vpop.f32.mrb[0].mxu0
        %v1243 = vpop.f32.mrb[0].mxu0
        %v1244 = vadd.f32 0.0, %v1243
        %v1245 = vpop.f32.mrb[0].mxu0
        %1246 = vmatprep.mubr.bf16.mxu0 0
        %1247 = vmatmul.mubr.bf16.gmra.mrb[0].mxu0 %v915
        %v1248 = vpop.f32.mrb[0].mxu0
        %v1249 = vadd.f32 0.0, %v1248
        %v1250 = vpop.f32.mrb[0].mxu0
        %v1251 = vpop.f32.mrb[0].mxu0
        %v1252 = vadd.f32 0.0, %v1251
        %v1253 = vpop.f32.mrb[0].mxu0
        %1254 = vmatprep.mubr.bf16.mxu0 0
        %1255 = vmatmul.mubr.bf16.gmra.mrb[0].mxu0 %v916
        %v1256 = vpop.f32.mrb[0].mxu0
        %v1257 = vadd.f32 0.0, %v1256
        %v1258 = vpop.f32.mrb[0].mxu0
        %v1259 = vpop.f32.mrb[0].mxu0
        %v1260 = vadd.f32 0.0, %v1259
        %v1261 = vpop.f32.mrb[0].mxu0
        %1262 = vdwg.mxu0
        %v1263 = vrot.slane %v1090, 1
        %v1264 = vrot.slane %v1094, 1
        %v1265 = vrot.slane %v1100, 1
        %v1266 = vrot.slane %v1104, 1
        %v1267 = vrot.slane %v1110, 1
        %v1268 = vrot.slane %v1114, 1
        %v1269 = vrot.slane %v1120, 1
        %v1270 = vrot.slane %v1124, 1
        %v1271 = vrot.slane %v1130, 1
        %v1272 = vrot.slane %v1134, 1
        %v1273 = vrot.slane %v1140, 1
        %v1274 = vrot.slane %v1144, 1
        %v1275 = vrot.slane %v1150, 1
        %v1276 = vrot.slane %v1154, 1
        %v1277 = vrot.slane %v1160, 1
        %v1278 = vrot.slane %v1164, 1
        %v1279 = vsel %vm741, %v1277, %v1278
        %v1280 = vsel %vm741, %v1276, %v1277
        %v1281 = vsel %vm741, %v1275, %v1276
        %v1282 = vsel %vm741, %v1274, %v1275
        %v1283 = vsel %vm741, %v1273, %v1274
        %v1284 = vsel %vm741, %v1272, %v1273
        %v1285 = vsel %vm741, %v1271, %v1272
        %v1286 = vsel %vm741, %v1270, %v1271
        %v1287 = vsel %vm741, %v1269, %v1270
        %v1288 = vsel %vm741, %v1268, %v1269
        %v1289 = vsel %vm741, %v1267, %v1268
        %v1290 = vsel %vm741, %v1266, %v1267
        %v1291 = vsel %vm741, %v1265, %v1266
        %v1292 = vsel %vm741, %v1264, %v1265
        %v1293 = vsel %vm741, %v1263, %v1264
        %v1294 = vsel %vm741, %v1278, %v1263
        %v1295 = vadd.f32 %v1088, %v1293
        %v1296 = vadd.f32 %v1092, %v1292
        %v1297 = vadd.f32 %v1098, %v1291
        %v1298 = vadd.f32 %v1102, %v1290
        %v1299 = vadd.f32 %v1108, %v1289
        %v1300 = vadd.f32 %v1112, %v1288
        %v1301 = vadd.f32 %v1118, %v1287
        %v1302 = vadd.f32 %v1122, %v1286
        %v1303 = vadd.f32 %v1128, %v1285
        %v1304 = vadd.f32 %v1132, %v1284
        %v1305 = vadd.f32 %v1138, %v1283
        %v1306 = vadd.f32 %v1142, %v1282
        %v1307 = vadd.f32 %v1148, %v1281
        %v1308 = vadd.f32 %v1152, %v1280
        %v1309 = vadd.f32 %v1158, %v1279
        %v1310 = vadd.f32 %v1162, %v1294
        %v1311 = vrot.slane %v1201, 2
        %v1312 = vrot.slane %v1204, 2
        %v1313 = vrot.slane %v1209, 2
        %v1314 = vrot.slane %v1212, 2
        %v1315 = vrot.slane %v1217, 2
        %v1316 = vrot.slane %v1220, 2
        %v1317 = vrot.slane %v1225, 2
        %v1318 = vrot.slane %v1228, 2
        %v1319 = vrot.slane %v1233, 2
        %v1320 = vrot.slane %v1236, 2
        %v1321 = vrot.slane %v1241, 2
        %v1322 = vrot.slane %v1244, 2
        %v1323 = vrot.slane %v1249, 2
        %v1324 = vrot.slane %v1252, 2
        %v1325 = vrot.slane %v1257, 2
        %v1326 = vrot.slane %v1260, 2
        %v1327 = vsel %vm790, %v1325, %v1326
        %v1328 = vsel %vm790, %v1324, %v1325
        %v1329 = vsel %vm790, %v1323, %v1324
        %v1330 = vsel %vm790, %v1322, %v1323
        %v1331 = vsel %vm790, %v1321, %v1322
        %v1332 = vsel %vm790, %v1320, %v1321
        %v1333 = vsel %vm790, %v1319, %v1320
        %v1334 = vsel %vm790, %v1318, %v1319
        %v1335 = vsel %vm790, %v1317, %v1318
        %v1336 = vsel %vm790, %v1316, %v1317
        %v1337 = vsel %vm790, %v1315, %v1316
        %v1338 = vsel %vm790, %v1314, %v1315
        %v1339 = vsel %vm790, %v1313, %v1314
        %v1340 = vsel %vm790, %v1312, %v1313
        %v1341 = vsel %vm790, %v1311, %v1312
        %v1342 = vsel %vm790, %v1326, %v1311
        %v1343 = vadd.f32 %v1295, %v1341
        %v1344 = vadd.f32 %v1296, %v1340
        %v1345 = vadd.f32 %v1297, %v1339
        %v1346 = vadd.f32 %v1298, %v1338
        %v1347 = vadd.f32 %v1299, %v1337
        %v1348 = vadd.f32 %v1300, %v1336
        %v1349 = vadd.f32 %v1301, %v1335
        %v1350 = vadd.f32 %v1302, %v1334
        %v1351 = vadd.f32 %v1303, %v1333
        %v1352 = vadd.f32 %v1304, %v1332
        %v1353 = vadd.f32 %v1305, %v1331
        %v1354 = vadd.f32 %v1306, %v1330
        %v1355 = vadd.f32 %v1307, %v1329
        %v1356 = vadd.f32 %v1308, %v1328
        %v1357 = vadd.f32 %v1309, %v1327
        %v1358 = vadd.f32 %v1310, %v1342
        %v1359 = vadd.f32 %v807, %v1343
        %v1360 = vadd.f32 %v808, %v1344
        %v1361 = vadd.f32 %v809, %v1345
        %v1362 = vadd.f32 %v810, %v1346
        %v1363 = vadd.f32 %v811, %v1347
        %v1364 = vadd.f32 %v812, %v1348
        %v1365 = vadd.f32 %v813, %v1349
        %v1366 = vadd.f32 %v814, %v1350
        %v1367 = vadd.f32 %v815, %v1351
        %v1368 = vadd.f32 %v816, %v1352
        %v1369 = vadd.f32 %v817, %v1353
        %v1370 = vadd.f32 %v818, %v1354
        %v1371 = vadd.f32 %v819, %v1355
        %v1372 = vadd.f32 %v820, %v1356
        %v1373 = vadd.f32 %v821, %v1357
        %v1374 = vadd.f32 %v822, %v1358
        %s1375 = sadd.s32 %s284, 32
        %s1376 = sshra.s32 %s1375, 3
        %s1377 = sand.u32 %s1375, 7
        %s1378 = smul.addr %s1376, 4
        %s1379 = scalar_lea.vmem %s239, %s1378 [#allocation2]
        %v1380 = vld [vmem:[%s1379] sm:$0xf]
        %v1381 = vld [vmem:[%s1379 + $0x4] sm:$0xf]
        %v1382 = vld [vmem:[%s1379 + $0x8] sm:$0xf]
        %v1383 = vld [vmem:[%s1379 + $0xc] sm:$0xf]
        %v1384 = vld [vmem:[%s1379 + $0x10] sm:$0xf]
        %v1385 = vld [vmem:[%s1379 + $0x14] sm:$0xf]
        %v1386 = vld [vmem:[%s1379 + $0x18] sm:$0xf]
        %v1387 = vld [vmem:[%s1379 + $0x1c] sm:$0xf]
        %v1388 = vld [vmem:[%s1379 + $0x20] sm:$0xf]
        %v1389 = vld [vmem:[%s1379 + $0x24] sm:$0xf]
        %v1390 = vld [vmem:[%s1379 + $0x28] sm:$0xf]
        %v1391 = vld [vmem:[%s1379 + $0x2c] sm:$0xf]
        %v1392 = vld [vmem:[%s1379 + $0x30] sm:$0xf]
        %v1393 = vld [vmem:[%s1379 + $0x34] sm:$0xf]
        %v1394 = vld [vmem:[%s1379 + $0x38] sm:$0xf]
        %v1395 = vld [vmem:[%s1379 + $0x3c] sm:$0xf]
        %s1396 = scalar_lea.vmem [#allocation5], 384
        %v1397 = vld [vmem:[%s1396] sm:$0xff]
        %v1398 = vld [vmem:[%s1396 + $0x8] sm:$0xf]
        %v1399 = vld [vmem:[%s1396 + $0xc] sm:$0xff]
        %v1400 = vld [vmem:[%s1396 + $0x14] sm:$0xf]
        %v1401 = vld [vmem:[%s1396 + $0x18] sm:$0xff]
        %v1402 = vld [vmem:[%s1396 + $0x20] sm:$0xf]
        %v1403 = vld [vmem:[%s1396 + $0x24] sm:$0xff]
        %v1404 = vld [vmem:[%s1396 + $0x2c] sm:$0xf]
        %v1405 = vld [vmem:[%s1396 + $0x30] sm:$0xff]
        %v1406 = vld [vmem:[%s1396 + $0x38] sm:$0xf]
        %v1407 = vld [vmem:[%s1396 + $0x3c] sm:$0xff]
        %v1408 = vld [vmem:[%s1396 + $0x44] sm:$0xf]
        %v1409 = vld [vmem:[%s1396 + $0x48] sm:$0xff]
        %v1410 = vld [vmem:[%s1396 + $0x50] sm:$0xf]
        %v1411 = vld [vmem:[%s1396 + $0x54] sm:$0xff]
        %v1412 = vld [vmem:[%s1396 + $0x5c] sm:$0xf]
        %v1413 = vld [vmem:[%s1396 + $0x60] sm:$0xff]
        %v1414 = vld [vmem:[%s1396 + $0x68] sm:$0xf]
        %v1415 = vld [vmem:[%s1396 + $0x6c] sm:$0xff]
        %v1416 = vld [vmem:[%s1396 + $0x74] sm:$0xf]
        %v1417 = vld [vmem:[%s1396 + $0x78] sm:$0xff]
        %v1418 = vld [vmem:[%s1396 + $0x80] sm:$0xf]
        %v1419 = vld [vmem:[%s1396 + $0x84] sm:$0xff]
        %v1420 = vld [vmem:[%s1396 + $0x8c] sm:$0xf]
        %v1421 = vld [vmem:[%s1396 + $0x90] sm:$0xff]
        %v1422 = vld [vmem:[%s1396 + $0x98] sm:$0xf]
        %v1423 = vld [vmem:[%s1396 + $0x9c] sm:$0xff]
        %v1424 = vld [vmem:[%s1396 + $0xa4] sm:$0xf]
        %v1425 = vld [vmem:[%s1396 + $0xa8] sm:$0xff]
        %v1426 = vld [vmem:[%s1396 + $0xb0] sm:$0xf]
        %v1427 = vld [vmem:[%s1396 + $0xb4] sm:$0xff]
        %v1428 = vld [vmem:[%s1396 + $0xbc] sm:$0xf]
        %v1445 = vunpack.c.l.b16 %v1380
        %v1446 = vunpack.c.l.b16 %v1381
        %v1447 = vunpack.c.l.b16 %v1382
        %v1448 = vunpack.c.l.b16 %v1383
        %v1449 = vunpack.c.l.b16 %v1384
        %v1450 = vunpack.c.l.b16 %v1385
        %v1451 = vunpack.c.l.b16 %v1386
        %v1452 = vunpack.c.l.b16 %v1387
        %v1453 = vunpack.c.l.b16 %v1388
        %v1454 = vunpack.c.l.b16 %v1389
        %v1455 = vunpack.c.l.b16 %v1390
        %v1456 = vunpack.c.l.b16 %v1391
        %v1457 = vunpack.c.l.b16 %v1392
        %v1458 = vunpack.c.l.b16 %v1393
        %v1459 = vunpack.c.l.b16 %v1394
        %v1460 = vunpack.c.l.b16 %v1395
        %v1461 = vpack.c.b16 %v1446, %v1445
        %v1462 = vpack.c.b16 %v1448, %v1447
        %v1463 = vpack.c.b16 %v1450, %v1449
        %v1464 = vpack.c.b16 %v1452, %v1451
        %v1465 = vpack.c.b16 %v1454, %v1453
        %v1466 = vpack.c.b16 %v1456, %v1455
        %v1467 = vpack.c.b16 %v1458, %v1457
        %v1468 = vpack.c.b16 %v1460, %v1459
        %v1509 = vunpack.c.l.b16 %v1397
        %v1510 = vunpack.c.h.b16 %v1397
        %v1511 = vunpack.c.l.b16 %v1398
        %v1512 = vunpack.c.l.b16 %v1399
        %v1513 = vunpack.c.h.b16 %v1399
        %v1514 = vunpack.c.l.b16 %v1400
        %v1515 = vunpack.c.l.b16 %v1401
        %v1516 = vunpack.c.h.b16 %v1401
        %v1517 = vunpack.c.l.b16 %v1402
        %v1518 = vunpack.c.l.b16 %v1403
        %v1519 = vunpack.c.h.b16 %v1403
        %v1520 = vunpack.c.l.b16 %v1404
        %v1521 = vunpack.c.l.b16 %v1405
        %v1522 = vunpack.c.h.b16 %v1405
        %v1523 = vunpack.c.l.b16 %v1406
        %v1524 = vunpack.c.l.b16 %v1407
        %v1525 = vunpack.c.h.b16 %v1407
        %v1526 = vunpack.c.l.b16 %v1408
        %v1527 = vunpack.c.l.b16 %v1409
        %v1528 = vunpack.c.h.b16 %v1409
        %v1529 = vunpack.c.l.b16 %v1410
        %v1530 = vunpack.c.l.b16 %v1411
        %v1531 = vunpack.c.h.b16 %v1411
        %v1532 = vunpack.c.l.b16 %v1412
        %v1533 = vunpack.c.l.b16 %v1413
        %v1534 = vunpack.c.h.b16 %v1413
        %v1535 = vunpack.c.l.b16 %v1414
        %v1536 = vunpack.c.l.b16 %v1415
        %v1537 = vunpack.c.h.b16 %v1415
        %v1538 = vunpack.c.l.b16 %v1416
        %v1539 = vunpack.c.l.b16 %v1417
        %v1540 = vunpack.c.h.b16 %v1417
        %v1541 = vunpack.c.l.b16 %v1418
        %v1542 = vunpack.c.l.b16 %v1419
        %v1543 = vunpack.c.h.b16 %v1419
        %v1544 = vunpack.c.l.b16 %v1420
        %v1545 = vunpack.c.l.b16 %v1421
        %v1546 = vunpack.c.h.b16 %v1421
        %v1547 = vunpack.c.l.b16 %v1422
        %v1548 = vunpack.c.l.b16 %v1423
        %v1549 = vunpack.c.h.b16 %v1423
        %v1550 = vunpack.c.l.b16 %v1424
        %v1551 = vunpack.c.l.b16 %v1425
        %v1552 = vunpack.c.h.b16 %v1425
        %v1553 = vunpack.c.l.b16 %v1426
        %v1554 = vunpack.c.l.b16 %v1427
        %v1555 = vunpack.c.h.b16 %v1427
        %v1556 = vunpack.c.l.b16 %v1428
        %v1557 = vpack.c.b16 %v1512, %v1509
        %v1558 = vpack.c.b16 %v1513, %v1510
        %v1559 = vpack.c.b16 %v1514, %v1511
        %v1560 = vpack.c.b16 %v1518, %v1515
        %v1561 = vpack.c.b16 %v1519, %v1516
        %v1562 = vpack.c.b16 %v1520, %v1517
        %v1563 = vpack.c.b16 %v1524, %v1521
        %v1564 = vpack.c.b16 %v1525, %v1522
        %v1565 = vpack.c.b16 %v1526, %v1523
        %v1566 = vpack.c.b16 %v1530, %v1527
        %v1567 = vpack.c.b16 %v1531, %v1528
        %v1568 = vpack.c.b16 %v1532, %v1529
        %v1569 = vpack.c.b16 %v1536, %v1533
        %v1570 = vpack.c.b16 %v1537, %v1534
        %v1571 = vpack.c.b16 %v1538, %v1535
        %v1572 = vpack.c.b16 %v1542, %v1539
        %v1573 = vpack.c.b16 %v1543, %v1540
        %v1574 = vpack.c.b16 %v1544, %v1541
        %v1575 = vpack.c.b16 %v1548, %v1545
        %v1576 = vpack.c.b16 %v1549, %v1546
        %v1577 = vpack.c.b16 %v1550, %v1547
        %v1578 = vpack.c.b16 %v1554, %v1551
        %v1579 = vpack.c.b16 %v1555, %v1552
        %v1580 = vpack.c.b16 %v1556, %v1553
        %1605 = vmatprep.subr.bf16.mxu0 %v1558
        %1606 = vmatpush1.bf16.msra.mxu0 %v1557
        %1607 = vmatprep.subr.bf16.mxu0 %v1561
        %1608 = vmatpush1.bf16.msra.mxu0 %v1560
        %1609 = vmatprep.subr.bf16.mxu0 %v1564
        %1610 = vmatpush1.bf16.msra.mxu0 %v1563
        %1611 = vmatprep.subr.bf16.mxu0 %v1567
        %1612 = vmatpush1.bf16.msra.mxu0 %v1566
        %1613 = vmatprep.subr.bf16.mxu0 %v1570
        %1614 = vmatpush1.bf16.msra.mxu0 %v1569
        %1615 = vmatprep.subr.bf16.mxu0 %v1573
        %1616 = vmatpush1.bf16.msra.mxu0 %v1572
        %1617 = vmatprep.subr.bf16.mxu0 %v1576
        %1618 = vmatpush1.bf16.msra.mxu0 %v1575
        %1619 = vmatprep.subr.bf16.mxu0 %v1579
        %1620 = vmatpush1.bf16.msra.mxu0 %v1578
        %1621 = vmatprep.subr.bf16.mxu0 0
        %1622 = vmatpush1.bf16.msra.mxu0 0
        %1623 = vmatprep.subr.bf16.mxu0 0
        %1624 = vmatpush1.bf16.msra.mxu0 0
        %1625 = vmatprep.subr.bf16.mxu0 0
        %1626 = vmatpush1.bf16.msra.mxu0 0
        %1627 = vmatprep.subr.bf16.mxu0 0
        %1628 = vmatpush1.bf16.msra.mxu0 0
        %1629 = vmatprep.subr.bf16.mxu0 0
        %1630 = vmatpush1.bf16.msra.mxu0 0
        %1631 = vmatprep.subr.bf16.mxu0 0
        %1632 = vmatpush1.bf16.msra.mxu0 0
        %1633 = vmatprep.subr.bf16.mxu0 0
        %1634 = vmatpush1.bf16.msra.mxu0 0
        %1635 = vmatprep.subr.bf16.mxu0 0
        %1636 = vmatpush1.bf16.msra.mxu0 0
        %1637 = vmatprep.mubr.bf16.mxu0 0
        %1638 = vmatmul.mubr.bf16.gmra.mrb[0].mxu0 %v1461
        %v1639 = vpop.f32.mrb[0].mxu0
        %v1640 = vadd.f32 0.0, %v1639
        %v1641 = vpop.f32.mrb[0].mxu0
        %v1642 = vadd.f32 0.0, %v1641
        %v1643 = vpop.f32.mrb[0].mxu0
        %v1644 = vadd.f32 0.0, %v1643
        %v1645 = vpop.f32.mrb[0].mxu0
        %v1646 = vadd.f32 0.0, %v1645
        %1647 = vmatprep.mubr.bf16.mxu0 0
        %1648 = vmatmul.mubr.bf16.gmra.mrb[0].mxu0 %v1462
        %v1649 = vpop.f32.mrb[0].mxu0
        %v1650 = vadd.f32 0.0, %v1649
        %v1651 = vpop.f32.mrb[0].mxu0
        %v1652 = vadd.f32 0.0, %v1651
        %v1653 = vpop.f32.mrb[0].mxu0
        %v1654 = vadd.f32 0.0, %v1653
        %v1655 = vpop.f32.mrb[0].mxu0
        %v1656 = vadd.f32 0.0, %v1655
        %1657 = vmatprep.mubr.bf16.mxu0 0
        %1658 = vmatmul.mubr.bf16.gmra.mrb[0].mxu0 %v1463
        %v1659 = vpop.f32.mrb[0].mxu0
        %v1660 = vadd.f32 0.0, %v1659
        %v1661 = vpop.f32.mrb[0].mxu0
        %v1662 = vadd.f32 0.0, %v1661
        %v1663 = vpop.f32.mrb[0].mxu0
        %v1664 = vadd.f32 0.0, %v1663
        %v1665 = vpop.f32.mrb[0].mxu0
        %v1666 = vadd.f32 0.0, %v1665
        %1667 = vmatprep.mubr.bf16.mxu0 0
        %1668 = vmatmul.mubr.bf16.gmra.mrb[0].mxu0 %v1464
        %v1669 = vpop.f32.mrb[0].mxu0
        %v1670 = vadd.f32 0.0, %v1669
        %v1671 = vpop.f32.mrb[0].mxu0
        %v1672 = vadd.f32 0.0, %v1671
        %v1673 = vpop.f32.mrb[0].mxu0
        %v1674 = vadd.f32 0.0, %v1673
        %v1675 = vpop.f32.mrb[0].mxu0
        %v1676 = vadd.f32 0.0, %v1675
        %1677 = vmatprep.mubr.bf16.mxu0 0
        %1678 = vmatmul.mubr.bf16.gmra.mrb[0].mxu0 %v1465
        %v1679 = vpop.f32.mrb[0].mxu0
        %v1680 = vadd.f32 0.0, %v1679
        %v1681 = vpop.f32.mrb[0].mxu0
        %v1682 = vadd.f32 0.0, %v1681
        %v1683 = vpop.f32.mrb[0].mxu0
        %v1684 = vadd.f32 0.0, %v1683
        %v1685 = vpop.f32.mrb[0].mxu0
        %v1686 = vadd.f32 0.0, %v1685
        %1687 = vmatprep.mubr.bf16.mxu0 0
        %1688 = vmatmul.mubr.bf16.gmra.mrb[0].mxu0 %v1466
        %v1689 = vpop.f32.mrb[0].mxu0
        %v1690 = vadd.f32 0.0, %v1689
        %v1691 = vpop.f32.mrb[0].mxu0
        %v1692 = vadd.f32 0.0, %v1691
        %v1693 = vpop.f32.mrb[0].mxu0
        %v1694 = vadd.f32 0.0, %v1693
        %v1695 = vpop.f32.mrb[0].mxu0
        %v1696 = vadd.f32 0.0, %v1695
        %1697 = vmatprep.mubr.bf16.mxu0 0
        %1698 = vmatmul.mubr.bf16.gmra.mrb[0].mxu0 %v1467
        %v1699 = vpop.f32.mrb[0].mxu0
        %v1700 = vadd.f32 0.0, %v1699
        %v1701 = vpop.f32.mrb[0].mxu0
        %v1702 = vadd.f32 0.0, %v1701
        %v1703 = vpop.f32.mrb[0].mxu0
        %v1704 = vadd.f32 0.0, %v1703
        %v1705 = vpop.f32.mrb[0].mxu0
        %v1706 = vadd.f32 0.0, %v1705
        %1707 = vmatprep.mubr.bf16.mxu0 0
        %1708 = vmatmul.mubr.bf16.gmra.mrb[0].mxu0 %v1468
        %v1709 = vpop.f32.mrb[0].mxu0
        %v1710 = vadd.f32 0.0, %v1709
        %v1711 = vpop.f32.mrb[0].mxu0
        %v1712 = vadd.f32 0.0, %v1711
        %v1713 = vpop.f32.mrb[0].mxu0
        %v1714 = vadd.f32 0.0, %v1713
        %v1715 = vpop.f32.mrb[0].mxu0
        %v1716 = vadd.f32 0.0, %v1715
        %1717 = vdwg.mxu0
        %1718 = vmatprep.subr.bf16.mxu0 0
        %1719 = vmatpush1.bf16.msra.mxu0 %v1559
        %1720 = vmatprep.subr.bf16.mxu0 0
        %1721 = vmatpush1.bf16.msra.mxu0 %v1562
        %1722 = vmatprep.subr.bf16.mxu0 0
        %1723 = vmatpush1.bf16.msra.mxu0 %v1565
        %1724 = vmatprep.subr.bf16.mxu0 0
        %1725 = vmatpush1.bf16.msra.mxu0 %v1568
        %1726 = vmatprep.subr.bf16.mxu0 0
        %1727 = vmatpush1.bf16.msra.mxu0 %v1571
        %1728 = vmatprep.subr.bf16.mxu0 0
        %1729 = vmatpush1.bf16.msra.mxu0 %v1574
        %1730 = vmatprep.subr.bf16.mxu0 0
        %1731 = vmatpush1.bf16.msra.mxu0 %v1577
        %1732 = vmatprep.subr.bf16.mxu0 0
        %1733 = vmatpush1.bf16.msra.mxu0 %v1580
        %1734 = vmatprep.subr.bf16.mxu0 0
        %1735 = vmatpush1.bf16.msra.mxu0 0
        %1736 = vmatprep.subr.bf16.mxu0 0
        %1737 = vmatpush1.bf16.msra.mxu0 0
        %1738 = vmatprep.subr.bf16.mxu0 0
        %1739 = vmatpush1.bf16.msra.mxu0 0
        %1740 = vmatprep.subr.bf16.mxu0 0
        %1741 = vmatpush1.bf16.msra.mxu0 0
        %1742 = vmatprep.subr.bf16.mxu0 0
        %1743 = vmatpush1.bf16.msra.mxu0 0
        %1744 = vmatprep.subr.bf16.mxu0 0
        %1745 = vmatpush1.bf16.msra.mxu0 0
        %1746 = vmatprep.subr.bf16.mxu0 0
        %1747 = vmatpush1.bf16.msra.mxu0 0
        %1748 = vmatprep.subr.bf16.mxu0 0
        %1749 = vmatpush1.bf16.msra.mxu0 0
        %1750 = vmatprep.mubr.bf16.mxu0 0
        %1751 = vmatmul.mubr.bf16.gmra.mrb[0].mxu0 %v1461
        %v1752 = vpop.f32.mrb[0].mxu0
        %v1753 = vadd.f32 0.0, %v1752
        %v1754 = vpop.f32.mrb[0].mxu0
        %v1755 = vpop.f32.mrb[0].mxu0
        %v1756 = vadd.f32 0.0, %v1755
        %v1757 = vpop.f32.mrb[0].mxu0
        %1758 = vmatprep.mubr.bf16.mxu0 0
        %1759 = vmatmul.mubr.bf16.gmra.mrb[0].mxu0 %v1462
        %v1760 = vpop.f32.mrb[0].mxu0
        %v1761 = vadd.f32 0.0, %v1760
        %v1762 = vpop.f32.mrb[0].mxu0
        %v1763 = vpop.f32.mrb[0].mxu0
        %v1764 = vadd.f32 0.0, %v1763
        %v1765 = vpop.f32.mrb[0].mxu0
        %1766 = vmatprep.mubr.bf16.mxu0 0
        %1767 = vmatmul.mubr.bf16.gmra.mrb[0].mxu0 %v1463
        %v1768 = vpop.f32.mrb[0].mxu0
        %v1769 = vadd.f32 0.0, %v1768
        %v1770 = vpop.f32.mrb[0].mxu0
        %v1771 = vpop.f32.mrb[0].mxu0
        %v1772 = vadd.f32 0.0, %v1771
        %v1773 = vpop.f32.mrb[0].mxu0
        %1774 = vmatprep.mubr.bf16.mxu0 0
        %1775 = vmatmul.mubr.bf16.gmra.mrb[0].mxu0 %v1464
        %v1776 = vpop.f32.mrb[0].mxu0
        %v1777 = vadd.f32 0.0, %v1776
        %v1778 = vpop.f32.mrb[0].mxu0
        %v1779 = vpop.f32.mrb[0].mxu0
        %v1780 = vadd.f32 0.0, %v1779
        %v1781 = vpop.f32.mrb[0].mxu0
        %1782 = vmatprep.mubr.bf16.mxu0 0
        %1783 = vmatmul.mubr.bf16.gmra.mrb[0].mxu0 %v1465
        %v1784 = vpop.f32.mrb[0].mxu0
        %v1785 = vadd.f32 0.0, %v1784
        %v1786 = vpop.f32.mrb[0].mxu0
        %v1787 = vpop.f32.mrb[0].mxu0
        %v1788 = vadd.f32 0.0, %v1787
        %v1789 = vpop.f32.mrb[0].mxu0
        %1790 = vmatprep.mubr.bf16.mxu0 0
        %1791 = vmatmul.mubr.bf16.gmra.mrb[0].mxu0 %v1466
        %v1792 = vpop.f32.mrb[0].mxu0
        %v1793 = vadd.f32 0.0, %v1792
        %v1794 = vpop.f32.mrb[0].mxu0
        %v1795 = vpop.f32.mrb[0].mxu0
        %v1796 = vadd.f32 0.0, %v1795
        %v1797 = vpop.f32.mrb[0].mxu0
        %1798 = vmatprep.mubr.bf16.mxu0 0
        %1799 = vmatmul.mubr.bf16.gmra.mrb[0].mxu0 %v1467
        %v1800 = vpop.f32.mrb[0].mxu0
        %v1801 = vadd.f32 0.0, %v1800
        %v1802 = vpop.f32.mrb[0].mxu0
        %v1803 = vpop.f32.mrb[0].mxu0
        %v1804 = vadd.f32 0.0, %v1803
        %v1805 = vpop.f32.mrb[0].mxu0
        %1806 = vmatprep.mubr.bf16.mxu0 0
        %1807 = vmatmul.mubr.bf16.gmra.mrb[0].mxu0 %v1468
        %v1808 = vpop.f32.mrb[0].mxu0
        %v1809 = vadd.f32 0.0, %v1808
        %v1810 = vpop.f32.mrb[0].mxu0
        %v1811 = vpop.f32.mrb[0].mxu0
        %v1812 = vadd.f32 0.0, %v1811
        %v1813 = vpop.f32.mrb[0].mxu0
        %1814 = vdwg.mxu0
        %v1815 = vrot.slane %v1642, 1
        %v1816 = vrot.slane %v1646, 1
        %v1817 = vrot.slane %v1652, 1
        %v1818 = vrot.slane %v1656, 1
        %v1819 = vrot.slane %v1662, 1
        %v1820 = vrot.slane %v1666, 1
        %v1821 = vrot.slane %v1672, 1
        %v1822 = vrot.slane %v1676, 1
        %v1823 = vrot.slane %v1682, 1
        %v1824 = vrot.slane %v1686, 1
        %v1825 = vrot.slane %v1692, 1
        %v1826 = vrot.slane %v1696, 1
        %v1827 = vrot.slane %v1702, 1
        %v1828 = vrot.slane %v1706, 1
        %v1829 = vrot.slane %v1712, 1
        %v1830 = vrot.slane %v1716, 1
        %v1831 = vsel %vm741, %v1829, %v1830
        %v1832 = vsel %vm741, %v1828, %v1829
        %v1833 = vsel %vm741, %v1827, %v1828
        %v1834 = vsel %vm741, %v1826, %v1827
        %v1835 = vsel %vm741, %v1825, %v1826
        %v1836 = vsel %vm741, %v1824, %v1825
        %v1837 = vsel %vm741, %v1823, %v1824
        %v1838 = vsel %vm741, %v1822, %v1823
        %v1839 = vsel %vm741, %v1821, %v1822
        %v1840 = vsel %vm741, %v1820, %v1821
        %v1841 = vsel %vm741, %v1819, %v1820
        %v1842 = vsel %vm741, %v1818, %v1819
        %v1843 = vsel %vm741, %v1817, %v1818
        %v1844 = vsel %vm741, %v1816, %v1817
        %v1845 = vsel %vm741, %v1815, %v1816
        %v1846 = vsel %vm741, %v1830, %v1815
        %v1847 = vadd.f32 %v1640, %v1845
        %v1848 = vadd.f32 %v1644, %v1844
        %v1849 = vadd.f32 %v1650, %v1843
        %v1850 = vadd.f32 %v1654, %v1842
        %v1851 = vadd.f32 %v1660, %v1841
        %v1852 = vadd.f32 %v1664, %v1840
        %v1853 = vadd.f32 %v1670, %v1839
        %v1854 = vadd.f32 %v1674, %v1838
        %v1855 = vadd.f32 %v1680, %v1837
        %v1856 = vadd.f32 %v1684, %v1836
        %v1857 = vadd.f32 %v1690, %v1835
        %v1858 = vadd.f32 %v1694, %v1834
        %v1859 = vadd.f32 %v1700, %v1833
        %v1860 = vadd.f32 %v1704, %v1832
        %v1861 = vadd.f32 %v1710, %v1831
        %v1862 = vadd.f32 %v1714, %v1846
        %v1863 = vrot.slane %v1753, 2
        %v1864 = vrot.slane %v1756, 2
        %v1865 = vrot.slane %v1761, 2
        %v1866 = vrot.slane %v1764, 2
        %v1867 = vrot.slane %v1769, 2
        %v1868 = vrot.slane %v1772, 2
        %v1869 = vrot.slane %v1777, 2
        %v1870 = vrot.slane %v1780, 2
        %v1871 = vrot.slane %v1785, 2
        %v1872 = vrot.slane %v1788, 2
        %v1873 = vrot.slane %v1793, 2
        %v1874 = vrot.slane %v1796, 2
        %v1875 = vrot.slane %v1801, 2
        %v1876 = vrot.slane %v1804, 2
        %v1877 = vrot.slane %v1809, 2
        %v1878 = vrot.slane %v1812, 2
        %v1879 = vsel %vm790, %v1877, %v1878
        %v1880 = vsel %vm790, %v1876, %v1877
        %v1881 = vsel %vm790, %v1875, %v1876
        %v1882 = vsel %vm790, %v1874, %v1875
        %v1883 = vsel %vm790, %v1873, %v1874
        %v1884 = vsel %vm790, %v1872, %v1873
        %v1885 = vsel %vm790, %v1871, %v1872
        %v1886 = vsel %vm790, %v1870, %v1871
        %v1887 = vsel %vm790, %v1869, %v1870
        %v1888 = vsel %vm790, %v1868, %v1869
        %v1889 = vsel %vm790, %v1867, %v1868
        %v1890 = vsel %vm790, %v1866, %v1867
        %v1891 = vsel %vm790, %v1865, %v1866
        %v1892 = vsel %vm790, %v1864, %v1865
        %v1893 = vsel %vm790, %v1863, %v1864
        %v1894 = vsel %vm790, %v1878, %v1863
        %v1895 = vadd.f32 %v1847, %v1893
        %v1896 = vadd.f32 %v1848, %v1892
        %v1897 = vadd.f32 %v1849, %v1891
        %v1898 = vadd.f32 %v1850, %v1890
        %v1899 = vadd.f32 %v1851, %v1889
        %v1900 = vadd.f32 %v1852, %v1888
        %v1901 = vadd.f32 %v1853, %v1887
        %v1902 = vadd.f32 %v1854, %v1886
        %v1903 = vadd.f32 %v1855, %v1885
        %v1904 = vadd.f32 %v1856, %v1884
        %v1905 = vadd.f32 %v1857, %v1883
        %v1906 = vadd.f32 %v1858, %v1882
        %v1907 = vadd.f32 %v1859, %v1881
        %v1908 = vadd.f32 %v1860, %v1880
        %v1909 = vadd.f32 %v1861, %v1879
        %v1910 = vadd.f32 %v1862, %v1894
        %v1911 = vadd.f32 %v1359, %v1895
        %v1912 = vadd.f32 %v1360, %v1896
        %v1913 = vadd.f32 %v1361, %v1897
        %v1914 = vadd.f32 %v1362, %v1898
        %v1915 = vadd.f32 %v1363, %v1899
        %v1916 = vadd.f32 %v1364, %v1900
        %v1917 = vadd.f32 %v1365, %v1901
        %v1918 = vadd.f32 %v1366, %v1902
        %v1919 = vadd.f32 %v1367, %v1903
        %v1920 = vadd.f32 %v1368, %v1904
        %v1921 = vadd.f32 %v1369, %v1905
        %v1922 = vadd.f32 %v1370, %v1906
        %v1923 = vadd.f32 %v1371, %v1907
        %v1924 = vadd.f32 %v1372, %v1908
        %v1925 = vadd.f32 %v1373, %v1909
        %v1926 = vadd.f32 %v1374, %v1910
        %v1927 = vld [vmem:[%s2] sm:$0x1]
        %v1929 = vlaneseq
        %v1930 = vshrl.u32 %v1929, 7
        %v1931 = vsub.s32 0, %v1930
        %v1932 = vrot.slane %v1927, %v1931
        %v1934 = vadd.f32 %v1911, %v1932
        %v1935 = vadd.f32 %v1912, %v1932
        %v1936 = vadd.f32 %v1913, %v1932
        %v1937 = vadd.f32 %v1914, %v1932
        %v1938 = vadd.f32 %v1915, %v1932
        %v1939 = vadd.f32 %v1916, %v1932
        %v1940 = vadd.f32 %v1917, %v1932
        %v1941 = vadd.f32 %v1918, %v1932
        %v1942 = vadd.f32 %v1919, %v1932
        %v1943 = vadd.f32 %v1920, %v1932
        %v1944 = vadd.f32 %v1921, %v1932
        %v1945 = vadd.f32 %v1922, %v1932
        %v1946 = vadd.f32 %v1923, %v1932
        %v1947 = vadd.f32 %v1924, %v1932
        %v1948 = vadd.f32 %v1925, %v1932
        %v1949 = vadd.f32 %v1926, %v1932
        %s1950 = smul.addr %s824, 4
        %s1951 = scalar_lea.vmem %s252, %s1950 [#allocation7]
        %v1952 = vld [vmem:[%s1951] sm:$0xf]
        %v1953 = vld [vmem:[%s1951 + $0x4] sm:$0xf]
        %v1954 = vld [vmem:[%s1951 + $0x8] sm:$0xf]
        %v1955 = vld [vmem:[%s1951 + $0xc] sm:$0xf]
        %v1956 = vld [vmem:[%s1951 + $0x10] sm:$0xf]
        %v1957 = vld [vmem:[%s1951 + $0x14] sm:$0xf]
        %v1958 = vld [vmem:[%s1951 + $0x18] sm:$0xf]
        %v1959 = vld [vmem:[%s1951 + $0x1c] sm:$0xf]
        %v1960 = vld [vmem:[%s1951 + $0x20] sm:$0xf]
        %v1961 = vld [vmem:[%s1951 + $0x24] sm:$0xf]
        %v1962 = vld [vmem:[%s1951 + $0x28] sm:$0xf]
        %v1963 = vld [vmem:[%s1951 + $0x2c] sm:$0xf]
        %v1964 = vld [vmem:[%s1951 + $0x30] sm:$0xf]
        %v1965 = vld [vmem:[%s1951 + $0x34] sm:$0xf]
        %v1966 = vld [vmem:[%s1951 + $0x38] sm:$0xf]
        %v1967 = vld [vmem:[%s1951 + $0x3c] sm:$0xf]
        %v1968 = vunpack.c.l.bf16 %v1952
        %v1969 = vunpack.c.l.bf16 %v1953
        %v1970 = vunpack.c.l.bf16 %v1954
        %v1971 = vunpack.c.l.bf16 %v1955
        %v1972 = vunpack.c.l.bf16 %v1956
        %v1973 = vunpack.c.l.bf16 %v1957
        %v1974 = vunpack.c.l.bf16 %v1958
        %v1975 = vunpack.c.l.bf16 %v1959
        %v1976 = vunpack.c.l.bf16 %v1960
        %v1977 = vunpack.c.l.bf16 %v1961
        %v1978 = vunpack.c.l.bf16 %v1962
        %v1979 = vunpack.c.l.bf16 %v1963
        %v1980 = vunpack.c.l.bf16 %v1964
        %v1981 = vunpack.c.l.bf16 %v1965
        %v1982 = vunpack.c.l.bf16 %v1966
        %v1983 = vunpack.c.l.bf16 %v1967
        %v1984 = vrot.slane %v1968, 1
        %v1985 = vrot.slane %v1969, 1
        %v1986 = vrot.slane %v1970, 1
        %v1987 = vrot.slane %v1971, 1
        %v1988 = vrot.slane %v1972, 1
        %v1989 = vrot.slane %v1973, 1
        %v1990 = vrot.slane %v1974, 1
        %v1991 = vrot.slane %v1975, 1
        %v1992 = vrot.slane %v1976, 1
        %v1993 = vrot.slane %v1977, 1
        %v1994 = vrot.slane %v1978, 1
        %v1995 = vrot.slane %v1979, 1
        %v1996 = vrot.slane %v1980, 1
        %v1997 = vrot.slane %v1981, 1
        %v1998 = vrot.slane %v1982, 1
        %v1999 = vrot.slane %v1983, 1
        %v2000 = vsel %vm741, %v1998, %v1999
        %v2001 = vsel %vm741, %v1997, %v1998
        %v2002 = vsel %vm741, %v1996, %v1997
        %v2003 = vsel %vm741, %v1995, %v1996
        %v2004 = vsel %vm741, %v1994, %v1995
        %v2005 = vsel %vm741, %v1993, %v1994
        %v2006 = vsel %vm741, %v1992, %v1993
        %v2007 = vsel %vm741, %v1991, %v1992
        %v2008 = vsel %vm741, %v1990, %v1991
        %v2009 = vsel %vm741, %v1989, %v1990
        %v2010 = vsel %vm741, %v1988, %v1989
        %v2011 = vsel %vm741, %v1987, %v1988
        %v2012 = vsel %vm741, %v1986, %v1987
        %v2013 = vsel %vm741, %v1985, %v1986
        %v2014 = vsel %vm741, %v1984, %v1985
        %v2015 = vsel %vm741, %v1999, %v1984
        %v2016 = vadd.f32 %v1934, %v2014
        %v2017 = vadd.f32 %v1935, %v2013
        %v2018 = vadd.f32 %v1936, %v2012
        %v2019 = vadd.f32 %v1937, %v2011
        %v2020 = vadd.f32 %v1938, %v2010
        %v2021 = vadd.f32 %v1939, %v2009
        %v2022 = vadd.f32 %v1940, %v2008
        %v2023 = vadd.f32 %v1941, %v2007
        %v2024 = vadd.f32 %v1942, %v2006
        %v2025 = vadd.f32 %v1943, %v2005
        %v2026 = vadd.f32 %v1944, %v2004
        %v2027 = vadd.f32 %v1945, %v2003
        %v2028 = vadd.f32 %v1946, %v2002
        %v2029 = vadd.f32 %v1947, %v2001
        %v2030 = vadd.f32 %v1948, %v2000
        %v2031 = vadd.f32 %v1949, %v2015
        %v2032 = vmax.f32 %v2016, 0.0
        %v2033 = vmax.f32 %v2017, 0.0
        %v2034 = vmax.f32 %v2018, 0.0
        %v2035 = vmax.f32 %v2019, 0.0
        %v2036 = vmax.f32 %v2020, 0.0
        %v2037 = vmax.f32 %v2021, 0.0
        %v2038 = vmax.f32 %v2022, 0.0
        %v2039 = vmax.f32 %v2023, 0.0
        %v2040 = vmax.f32 %v2024, 0.0
        %v2041 = vmax.f32 %v2025, 0.0
        %v2042 = vmax.f32 %v2026, 0.0
        %v2043 = vmax.f32 %v2027, 0.0
        %v2044 = vmax.f32 %v2028, 0.0
        %v2045 = vmax.f32 %v2029, 0.0
        %v2046 = vmax.f32 %v2030, 0.0
        %v2047 = vmax.f32 %v2031, 0.0
        %v2048 = vpack.c.bf16 %v2033, %v2032
        %v2049 = vpack.c.bf16 %v2035, %v2034
        %v2050 = vpack.c.bf16 %v2037, %v2036
        %v2051 = vpack.c.bf16 %v2039, %v2038
        %v2052 = vpack.c.bf16 %v2041, %v2040
        %v2053 = vpack.c.bf16 %v2043, %v2042
        %v2054 = vpack.c.bf16 %v2045, %v2044
        %v2055 = vpack.c.bf16 %v2047, %v2046
        %v2064 = vunpack.c.l.b16 %v2048
        %v2065 = vunpack.c.h.b16 %v2048
        %v2066 = vunpack.c.l.b16 %v2049
        %v2067 = vunpack.c.h.b16 %v2049
        %v2068 = vunpack.c.l.b16 %v2050
        %v2069 = vunpack.c.h.b16 %v2050
        %v2070 = vunpack.c.l.b16 %v2051
        %v2071 = vunpack.c.h.b16 %v2051
        %v2072 = vunpack.c.l.b16 %v2052
        %v2073 = vunpack.c.h.b16 %v2052
        %v2074 = vunpack.c.l.b16 %v2053
        %v2075 = vunpack.c.h.b16 %v2053
        %v2076 = vunpack.c.l.b16 %v2054
        %v2077 = vunpack.c.h.b16 %v2054
        %v2078 = vunpack.c.l.b16 %v2055
        %v2079 = vunpack.c.h.b16 %v2055
        %v2080 = vpack.c.b16 %v2064, %v2064
        %v2081 = vpack.c.b16 %v2065, %v2065
        %v2082 = vpack.c.b16 %v2066, %v2066
        %v2083 = vpack.c.b16 %v2067, %v2067
        %v2084 = vpack.c.b16 %v2068, %v2068
        %v2085 = vpack.c.b16 %v2069, %v2069
        %v2086 = vpack.c.b16 %v2070, %v2070
        %v2087 = vpack.c.b16 %v2071, %v2071
        %v2088 = vpack.c.b16 %v2072, %v2072
        %v2089 = vpack.c.b16 %v2073, %v2073
        %v2090 = vpack.c.b16 %v2074, %v2074
        %v2091 = vpack.c.b16 %v2075, %v2075
        %v2092 = vpack.c.b16 %v2076, %v2076
        %v2093 = vpack.c.b16 %v2077, %v2077
        %v2094 = vpack.c.b16 %v2078, %v2078
        %v2095 = vpack.c.b16 %v2079, %v2079
        %2112 = vst [vmem:[%s281] sm:$0xf] %v2080
        %2113 = vst [vmem:[%s281 + $0x4] sm:$0xf] %v2081
        %2114 = vst [vmem:[%s281 + $0x8] sm:$0xf] %v2082
        %2115 = vst [vmem:[%s281 + $0xc] sm:$0xf] %v2083
        %2116 = vst [vmem:[%s281 + $0x10] sm:$0xf] %v2084
        %2117 = vst [vmem:[%s281 + $0x14] sm:$0xf] %v2085
        %2118 = vst [vmem:[%s281 + $0x18] sm:$0xf] %v2086
        %2119 = vst [vmem:[%s281 + $0x1c] sm:$0xf] %v2087
        %2120 = vst [vmem:[%s281 + $0x20] sm:$0xf] %v2088
        %2121 = vst [vmem:[%s281 + $0x24] sm:$0xf] %v2089
        %2122 = vst [vmem:[%s281 + $0x28] sm:$0xf] %v2090
        %2123 = vst [vmem:[%s281 + $0x2c] sm:$0xf] %v2091
        %2124 = vst [vmem:[%s281 + $0x30] sm:$0xf] %v2092
        %2125 = vst [vmem:[%s281 + $0x34] sm:$0xf] %v2093
        %2126 = vst [vmem:[%s281 + $0x38] sm:$0xf] %v2094
        %2127 = vst [vmem:[%s281 + $0x3c] sm:$0xf] %v2095
        %s2128 = sand.u32 %s138, 1
        %s2129 = scalar_lea.sflag [#allocation4], %s2128
        %s2130 = sand.u32 %s138, 1
        %s2131 = smul.addr %s2130, 64
        %s2132 = scalar_lea.vmem [#allocation8], %s2131
        // Predicated region
        $region49: #{tpu_custom_call.1} parent=35 // pred_check
          %p2133 = pneg %p148
        $region50: #{tpu_custom_call.1} parent=35 // pred_check_branch
          %2135 = sbr.rel (%p2133) target = $region52
        $region51: #{tpu_custom_call.1} parent=35 // pred_region
          %s2136 = smul.u32 16, %s27
          %s2138 = ssub.s32 1024, 1024
          %2139 = vsyncadd %s2129, %s2138
          %s2140 = smul.addr %s26, 16
          %s2141 = sadd.s32 %s2136, %s2140
          %s2142 = smul.addr %s2141, 64
          %s2143 = scalar_lea.hbm %s4, %s2142
          %s2144 = sshll.u32 %s2132, 4
          %s2145 = int_to_ptr.vmem [resolvable:$true] %s2144
          %2150 = dma.vmem_to_hbm [thread:$0]  %s2145, 1024, %s2143, %s2129, 64, 64, 4
        $region52: #{tpu_custom_call.1} parent=35 // pred_fallthru
          _
      $region36: #{tpu_custom_call.1} parent=5 // pred_fallthru
        _
      %p2151 = scmp.le.s32.totalorder 2, %s17
      // Predicated region
      $region53: #{tpu_custom_call.1} parent=5 // pred_check
        %p2152 = pneg %p2151
      $region54: #{tpu_custom_call.1} parent=5 // pred_check_branch
        %2154 = sbr.rel (%p2152) target = $region56
      $region55: #{tpu_custom_call.1} parent=5 // pred_region
        %s2155 = ssub.s32 %s17, 2
        // Predicated region
        $region57: #{tpu_custom_call.1} parent=55 // pred_check
          %p2156 = pneg %p154
        $region58: #{tpu_custom_call.1} parent=55 // pred_check_branch
          %2158 = sbr.rel (%p2156) target = $region60
        $region59: #{tpu_custom_call.1} parent=55 // pred_region
          %s2159 = sand.u32 %s139, 1
          %s2160 = scalar_lea.sflag [#allocation4], %s2159
          %s2161 = sand.u32 %s139, 1
          %s2162 = smul.addr %s2161, 64
          %s2163 = scalar_lea.vmem [#allocation8], %s2162
          %2164 = dma.done %s2160, 1024
        $region60: #{tpu_custom_call.1} parent=55 // pred_fallthru
          _
      $region56: #{tpu_custom_call.1} parent=5 // pred_fallthru
        _
    $region6: #{tpu_custom_call.1} parent=1 // loop_footer
      %s21 = sadd.s32 1, %s17
    $region7: #{tpu_custom_call.1} parent=1 // loop_footer_branch
      %16 = sbr.rel target = $region3
    $region8: #{tpu_custom_call.1} parent=1 // loop_exit
      _
    %2165 = vsyncpa [#allocation3], 1
    %s2166 = scalar_lea.sflag [#allocation3], 1
    %2167 = vsyncpa %s2166, 1
    %2168 = vsyncpa [#allocation6], 1
    %2169 = vsyncpa [#allocation4], 1
    %s2170 = scalar_lea.sflag [#allocation4], 1
    %2171 = vsyncpa %s2170, 1

</llo_original>
